<compile_context>
chip_gen: v6e
topology: v6e:2x2x1
jax: 0.10.0
libtpu: 0.0.40
codegen_flags: <defaults>
</compile_context>

<pallas_src>
import functools

import jax
import jax.numpy as jnp
from jax.experimental import pallas as pl
from jax.experimental.pallas import tpu as pltpu


def _contrastive_kernel(feat_i_ref, feat_j_ref, sim_ref, out_ref, *acc_refs,
                        mode, inv_temp, lmda, beta, batch):
    i = pl.program_id(0)                 # row tile    (parallel)
    j = pl.program_id(1)                 # column tile (reduction)
    last_j = pl.num_programs(1) - 1

    sim = sim_ref[...].astype(jnp.float32)          # (tm, tn)
    tm, tn = sim.shape

    def _local_diag():                   # only traced inside i == j branches
        r = jax.lax.broadcasted_iota(jnp.int32, (tm, tn), 0)
        c = jax.lax.broadcasted_iota(jnp.int32, (tm, tn), 1)
        return r == c                    # valid because tm == tn (aligned tiles)

    # Gram tile: contract on D for both operands (== A @ B.T without the
    # explicit transpose).  Fold 1/temperature into the row operand except for
    # 'l2', which needs temperature * fdc == raw dot product.
    f_i = feat_i_ref[...].astype(jnp.float32)
    if mode != 'l2':
        f_i = f_i * inv_temp
    f_j = feat_j_ref[...].astype(jnp.float32)
    fdc = jax.lax.dot_general(
        f_i, f_j,
        dimension_numbers=(((1,), (1,)), ((), ())),
        preferred_element_type=jnp.float32)         # (tm, tn)

    if mode == 'out':
        m_ref, l_ref, sr_ref, sm_ref = acc_refs

        @pl.when(j == 0)
        def _():
            m_ref[...] = jnp.full_like(m_ref, -jnp.inf)
            l_ref[...] = jnp.zeros_like(l_ref)
            sr_ref[...] = jnp.zeros_like(sr_ref)
            sm_ref[...] = jnp.zeros_like(sm_ref)

        relu_sim = jnp.maximum(sim, 0.0)
        mask = jnp.where(relu_sim > 0.0, 1.0, 0.0)
        abs_sim = jnp.abs(sim)
        thresholded = jnp.where(abs_sim > beta, abs_sim, beta)  # nn.Threshold
        relu_logits = relu_sim * fdc
        abs_logits = thresholded * fdc

        # Fused numerator pieces (mask * relu_logits == relu_logits, since
        # relu_logits is 0 exactly where mask is 0).
        sr_ref[...] += jnp.sum(relu_logits, axis=1, keepdims=True)
        sm_ref[...] += jnp.sum(mask, axis=1, keepdims=True)

        # Online logsumexp of off-diagonal abs_logits (the max includes the
        # diagonal, exactly like the reference; the lse value is unchanged).
        m_old = m_ref[...]
        m_new = jnp.maximum(m_old, jnp.max(abs_logits, axis=1, keepdims=True))
        alpha = jnp.exp(m_old - m_new)
        p = jnp.exp(abs_logits - m_new)
        p_sum = jnp.sum(p, axis=1, keepdims=True)
        m_ref[...] = m_new

        @pl.when(i != j)
        def _():
            l_ref[...] = alpha * l_ref[...] + p_sum

        @pl.when(i == j)
        def _():
            diag_p = jnp.sum(jnp.where(_local_diag(), p, 0.0),
                             axis=1, keepdims=True)
            l_ref[...] = alpha * l_ref[...] + (p_sum - diag_p)

        @pl.when(j == last_j)
        def _():
            lse = jnp.log(l_ref[...]) + m_ref[...]
            denom = lmda * lse
            out_ref[...] = ((sr_ref[...] - denom * sm_ref[...])
                            / (sm_ref[...] + 1e-7))

    elif mode == 'in':
        m_ref, lr_ref, la_ref = acc_refs

        @pl.when(j == 0)
        def _():
            m_ref[...] = jnp.full_like(m_ref, -jnp.inf)
            lr_ref[...] = jnp.zeros_like(lr_ref)
            la_ref[...] = jnp.zeros_like(la_ref)

        relu_sim = jnp.maximum(sim, 0.0)
        abs_sim = jnp.abs(sim)

        m_old = m_ref[...]
        m_new = jnp.maximum(m_old, jnp.max(fdc, axis=1, keepdims=True))
        alpha = jnp.exp(m_old - m_new)
        e = jnp.exp(fdc - m_new)
        lr_ref[...] = alpha * lr_ref[...] + jnp.sum(relu_sim * e, axis=1,
                                                    keepdims=True)
        la_ref[...] = alpha * la_ref[...] + jnp.sum(abs_sim * e, axis=1,
                                                    keepdims=True)
        m_ref[...] = m_new

        @pl.when(j == last_j)
        def _():
            out_ref[...] = (jnp.log(lr_ref[...] + 1e-7)
                            - jnp.log(la_ref[...] + 1e-7))

    elif mode == 'naive':
        (s_ref,) = acc_refs

        @pl.when(j == 0)
        def _():
            s_ref[...] = jnp.zeros_like(s_ref)

        term = sim * fdc

        @pl.when(i != j)
        def _():
            s_ref[...] += jnp.sum(term, axis=1, keepdims=True)

        @pl.when(i == j)
        def _():
            s_ref[...] += jnp.sum(jnp.where(_local_diag(), 0.0, term),
                                  axis=1, keepdims=True)

        @pl.when(j == last_j)
        def _():
            out_ref[...] = s_ref[...] * (1.0 / (batch - 1))

    elif mode == 'l2':
        (s_ref,) = acc_refs

        @pl.when(j == 0)
        def _():
            s_ref[...] = jnp.zeros_like(s_ref)

        @pl.when(i != j)
        def _():
            d = fdc - sim          # temperature * (dot/temperature) == dot
            s_ref[...] += jnp.sum(d * d, axis=1, keepdims=True)

        @pl.when(i == j)
        def _():
            d = jnp.where(_local_diag(), 0.0, fdc) - sim
            s_ref[...] += jnp.sum(d * d, axis=1, keepdims=True)

        @pl.when(j == last_j)
        def _():
            out_ref[...] = s_ref[...] * (1.0 / batch)   # row mean of l2_mat

    else:
        raise ValueError(f"unknown mode {mode!r}")


_NUM_SCRATCH = {'out': 4, 'in': 3, 'naive': 1, 'l2': 1}


def contrastive_loss(features, sim_mat, *, temperature=0.07, mode='out',
                     lmda=1.0, beta=0.0, block_size=None):
    assert features.ndim == 2
    B, D = features.shape
    assert sim_mat.shape == (B, B)
    assert mode in _NUM_SCRATCH, mode

    if block_size is None:
        # Square tiles (needed for the i == j diagonal gating).  256 keeps the
        # per-step working set (tile temporaries + double-buffered inputs)
        # comfortably inside scoped VMEM on v5e/v6e/v7x.
        block_size = next((t for t in (256, 128) if B % t == 0), B)
    t = block_size
    assert B % t == 0, "batch must be divisible by the tile size"
    grid = (B // t, B // t)

    kernel = functools.partial(
        _contrastive_kernel,
        mode=mode,
        inv_temp=float(1.0 / temperature),
        lmda=float(lmda),
        beta=float(beta),
        batch=int(B))

    rows = pl.pallas_call(
        kernel,
        out_shape=jax.ShapeDtypeStruct((B, 1), jnp.float32),
        grid_spec=pltpu.PrefetchScalarGridSpec(
            num_scalar_prefetch=0,
            grid=grid,
            in_specs=[
                pl.BlockSpec((t, D), lambda i, j: (i, 0)),   # row features
                pl.BlockSpec((t, D), lambda i, j: (j, 0)),   # col features
                pl.BlockSpec((t, t), lambda i, j: (i, j)),   # sim tile
            ],
            out_specs=pl.BlockSpec((t, 1), lambda i, j: (i, 0)),
            scratch_shapes=[pltpu.VMEM((t, 1), jnp.float32)] * _NUM_SCRATCH[mode],
        ),
        compiler_params=pltpu.CompilerParams(
            dimension_semantics=("parallel", "arbitrary"),
            # Explicit budget so the same plan fits v7x's smaller (64 MiB) VMEM.
            vmem_limit_bytes=32 * 1024 * 1024),
    )(features, features, sim_mat)

    per_row = rows[:, 0]
    if mode == 'l2':
        return jnp.mean(per_row)        # total / B^2
    return -jnp.mean(per_row)


def _reference(features, sim_mat, temperature=0.07, mode='out',
               lmda=1.0, beta=0.0):
    # Pure-JAX mirror of the PyTorch module for correctness checks.
    B = features.shape[0]
    diag_mask = jnp.ones((B, B), jnp.float32) - jnp.eye(B, dtype=jnp.float32)
    relu_sim = jnp.maximum(sim_mat, 0.0)
    mask = jnp.where(relu_sim > 0.0, 1.0, relu_sim)
    abs_sim = jnp.abs(sim_mat)
    fdc = (features @ features.T) / temperature
    if mode == 'out':
        relu_logits = relu_sim * fdc
        abs_logits = jnp.where(abs_sim > beta, abs_sim, beta) * fdc
        abs_max = jnp.max(abs_logits, axis=1, keepdims=True)
        denom = jnp.exp(abs_logits - abs_max) * diag_mask
        denom = lmda * (jnp.log(jnp.sum(denom, axis=1, keepdims=True)) + abs_max)
        log_prob = relu_logits - denom
        mlp = jnp.sum(mask * log_prob, axis=1) / (jnp.sum(mask, axis=1) + 1e-07)
        return -jnp.mean(mlp)
    if mode == 'in':
        lmax = jnp.max(fdc, axis=1, keepdims=True)
        e = jnp.exp(fdc - lmax)
        mlp = (jnp.log(jnp.sum(relu_sim * e, axis=1, keepdims=True) + 1e-07)
               - jnp.log(jnp.sum(abs_sim * e, axis=1, keepdims=True) + 1e-07))
        return -jnp.mean(mlp)
    if mode == 'naive':
        logits = sim_mat * fdc
        mlp = jnp.sum(diag_mask * logits, axis=1) / jnp.sum(diag_mask, axis=1)
        return -jnp.mean(mlp)
    if mode == 'l2':
        l2 = (temperature * fdc * diag_mask - sim_mat) ** 2
        return jnp.mean(l2)
    raise ValueError(mode)


if __name__ == "__main__":
    key = jax.random.PRNGKey(0)
    k1, k2 = jax.random.split(key)
    B, D = 256, 64
    features = jax.random.normal(k1, (B, D), dtype=jnp.float32)
    features = features / jnp.linalg.norm(features, axis=1, keepdims=True)
    sim_mat = jax.random.uniform(k2, (B, B), dtype=jnp.float32,
                                 minval=-1.0, maxval=1.0)
    sim_mat = 0.5 * (sim_mat + sim_mat.T)   # symmetric similarity matrix

    # block_size=128 -> 2x2 grid: exercises init / online-accumulate / finalize
    # plus both the diagonal-tile and off-diagonal-tile code paths.
    for mode in ('out', 'in', 'naive', 'l2'):
        loss = contrastive_loss(features, sim_mat, mode=mode, block_size=128)
        jax.block_until_ready(loss)
        ref = _reference(features, sim_mat, mode=mode)
        assert jnp.allclose(loss, ref, rtol=1e-4, atol=1e-4), (mode, loss, ref)

    print("KERNEL_OK")
</pallas_src>

<mosaic_0001>
module attributes {stable_mosaic.version = 11 : i64} {
  func.func @_contrastive_kernel(%arg0: i32, %arg1: i32, %arg2: memref<128x64xf32, #tpu.memory_space<vmem>>, %arg3: memref<128x64xf32, #tpu.memory_space<vmem>>, %arg4: memref<128x128xf32, #tpu.memory_space<vmem>>, %arg5: memref<128x1xf32, #tpu.memory_space<vmem>>, %arg6: memref<128x1xf32, #tpu.memory_space<vmem>>, %arg7: memref<128x1xf32, #tpu.memory_space<vmem>>, %arg8: memref<128x1xf32, #tpu.memory_space<vmem>>, %arg9: memref<128x1xf32, #tpu.memory_space<vmem>>) attributes {dimension_semantics = [#tpu.dimension_semantics<parallel>, #tpu.dimension_semantics<arbitrary>], iteration_bounds = array<i64: 2, 2>, scalar_prefetch = 0 : i64, scratch_operands = 4 : i64, tpu.core_type = #tpu.core_type<tc>, window_params = [{transform_indices = @transform_0, window_bounds = array<i64: 128, 64>}, {transform_indices = @transform_1, window_bounds = array<i64: 128, 64>}, {transform_indices = @transform_2, window_bounds = array<i64: 128, 128>}, {transform_indices = @transform_3, window_bounds = array<i64: 128, 1>}]} {
    %c0 = arith.constant 0 : index
    %c0_0 = arith.constant 0 : index
    %0 = vector.load %arg4[%c0, %c0_0] : memref<128x128xf32, #tpu.memory_space<vmem>>, vector<128x128xf32>
    %c0_1 = arith.constant 0 : index
    %c0_2 = arith.constant 0 : index
    %1 = vector.load %arg2[%c0_1, %c0_2] : memref<128x64xf32, #tpu.memory_space<vmem>>, vector<128x64xf32>
    %cst = arith.constant 14.2857141 : f32
    %2 = vector.broadcast %cst : f32 to vector<128x64xf32>
    %3 = arith.mulf %1, %2 : vector<128x64xf32>
    %c0_3 = arith.constant 0 : index
    %c0_4 = arith.constant 0 : index
    %4 = vector.load %arg3[%c0_3, %c0_4] : memref<128x64xf32, #tpu.memory_space<vmem>>, vector<128x64xf32>
    %cst_5 = arith.constant dense<0.000000e+00> : vector<128x128xf32>
    %5 = tpu.matmul %3, %4, %cst_5 {dimension_numbers = #tpu.dot_dimension_numbers<[1], [1], [0], [0], [0, 0, 1, 0], [], []>} : vector<128x64xf32>, vector<128x64xf32>, vector<128x128xf32> -> vector<128x128xf32>
    %c0_i32 = arith.constant 0 : i32
    %6 = arith.cmpi eq, %arg1, %c0_i32 : i32
    %7 = arith.extui %6 : i1 to i32
    %c0_i32_6 = arith.constant 0 : i32
    %8 = arith.cmpi ne, %7, %c0_i32_6 : i32
    scf.if %8 {
      %cst_32 = arith.constant 0xFF800000 : f32
      %54 = vector.broadcast %cst_32 : f32 to vector<128x1xf32>
      %c0_33 = arith.constant 0 : index
      %c0_34 = arith.constant 0 : index
      %55 = vector.load %arg6[%c0_33, %c0_34] : memref<128x1xf32, #tpu.memory_space<vmem>>, vector<128x1xf32>
      tpu.vector_store %arg6[%c0_33, %c0_34], %54 {strides = array<i32>} : memref<128x1xf32, #tpu.memory_space<vmem>>, vector<128x1xf32>,
      %cst_35 = arith.constant 0.000000e+00 : f32
      %56 = vector.broadcast %cst_35 : f32 to vector<128x1xf32>
      %c0_36 = arith.constant 0 : index
      %c0_37 = arith.constant 0 : index
      %57 = vector.load %arg7[%c0_36, %c0_37] : memref<128x1xf32, #tpu.memory_space<vmem>>, vector<128x1xf32>
      tpu.vector_store %arg7[%c0_36, %c0_37], %56 {strides = array<i32>} : memref<128x1xf32, #tpu.memory_space<vmem>>, vector<128x1xf32>,
      %cst_38 = arith.constant 0.000000e+00 : f32
      %58 = vector.broadcast %cst_38 : f32 to vector<128x1xf32>
      %c0_39 = arith.constant 0 : index
      %c0_40 = arith.constant 0 : index
      %59 = vector.load %arg8[%c0_39, %c0_40] : memref<128x1xf32, #tpu.memory_space<vmem>>, vector<128x1xf32>
      tpu.vector_store %arg8[%c0_39, %c0_40], %58 {strides = array<i32>} : memref<128x1xf32, #tpu.memory_space<vmem>>, vector<128x1xf32>,
      %cst_41 = arith.constant 0.000000e+00 : f32
      %60 = vector.broadcast %cst_41 : f32 to vector<128x1xf32>
      %c0_42 = arith.constant 0 : index
      %c0_43 = arith.constant 0 : index
      %61 = vector.load %arg9[%c0_42, %c0_43] : memref<128x1xf32, #tpu.memory_space<vmem>>, vector<128x1xf32>
      tpu.vector_store %arg9[%c0_42, %c0_43], %60 {strides = array<i32>} : memref<128x1xf32, #tpu.memory_space<vmem>>, vector<128x1xf32>,
    } else {
    }
    %cst_7 = arith.constant 0.000000e+00 : f32
    %9 = vector.broadcast %cst_7 : f32 to vector<128x128xf32>
    %10 = arith.maximumf %0, %9 : vector<128x128xf32>
    %cst_8 = arith.constant 0.000000e+00 : f32
    %11 = vector.broadcast %cst_8 : f32 to vector<128x128xf32>
    %12 = arith.cmpf ogt, %10, %11 : vector<128x128xf32>
    %cst_9 = arith.constant 1.000000e+00 : f32
    %cst_10 = arith.constant 0.000000e+00 : f32
    %13 = vector.broadcast %cst_9 : f32 to vector<128x128xf32>
    %14 = vector.broadcast %cst_10 : f32 to vector<128x128xf32>
    %15 = arith.select %12, %13, %14 : vector<128x128xi1>, vector<128x128xf32>
    %16 = math.absf %0 : vector<128x128xf32>
    %cst_11 = arith.constant 0.000000e+00 : f32
    %17 = vector.broadcast %cst_11 : f32 to vector<128x128xf32>
    %18 = arith.cmpf ogt, %16, %17 : vector<128x128xf32>
    %cst_12 = arith.constant 0.000000e+00 : f32
    %19 = vector.broadcast %cst_12 : f32 to vector<128x128xf32>
    %20 = arith.select %18, %16, %19 : vector<128x128xi1>, vector<128x128xf32>
    %21 = arith.mulf %10, %5 : vector<128x128xf32>
    %22 = arith.mulf %20, %5 : vector<128x128xf32>
    %c0_13 = arith.constant 0 : index
    %c0_14 = arith.constant 0 : index
    %23 = vector.load %arg8[%c0_13, %c0_14] : memref<128x1xf32, #tpu.memory_space<vmem>>, vector<128x1xf32>
    %cst_15 = arith.constant dense<0.000000e+00> : vector<128xf32>
    %24 = vector.multi_reduction <add>, %21, %cst_15 [1] : vector<128x128xf32> to vector<128xf32>
    %25 = vector.shape_cast %24 : vector<128xf32> to vector<128x1xf32>
    %26 = arith.addf %23, %25 : vector<128x1xf32>
    %c0_16 = arith.constant 0 : index
    %c0_17 = arith.constant 0 : index
    %27 = vector.load %arg8[%c0_16, %c0_17] : memref<128x1xf32, #tpu.memory_space<vmem>>, vector<128x1xf32>
    tpu.vector_store %arg8[%c0_16, %c0_17], %26 {strides = array<i32>} : memref<128x1xf32, #tpu.memory_space<vmem>>, vector<128x1xf32>,
    %c0_18 = arith.constant 0 : index
    %c0_19 = arith.constant 0 : index
    %28 = vector.load %arg9[%c0_18, %c0_19] : memref<128x1xf32, #tpu.memory_space<vmem>>, vector<128x1xf32>
    %cst_20 = arith.constant dense<0.000000e+00> : vector<128xf32>
    %29 = vector.multi_reduction <add>, %15, %cst_20 [1] : vector<128x128xf32> to vector<128xf32>
    %30 = vector.shape_cast %29 : vector<128xf32> to vector<128x1xf32>
    %31 = arith.addf %28, %30 : vector<128x1xf32>
    %c0_21 = arith.constant 0 : index
    %c0_22 = arith.constant 0 : index
    %32 = vector.load %arg9[%c0_21, %c0_22] : memref<128x1xf32, #tpu.memory_space<vmem>>, vector<128x1xf32>
    tpu.vector_store %arg9[%c0_21, %c0_22], %31 {strides = array<i32>} : memref<128x1xf32, #tpu.memory_space<vmem>>, vector<128x1xf32>,
    %c0_23 = arith.constant 0 : index
    %c0_24 = arith.constant 0 : index
    %33 = vector.load %arg6[%c0_23, %c0_24] : memref<128x1xf32, #tpu.memory_space<vmem>>, vector<128x1xf32>
    %cst_25 = arith.constant dense<0xFF800000> : vector<128xf32>
    %34 = vector.multi_reduction <maximumf>, %22, %cst_25 [1] : vector<128x128xf32> to vector<128xf32>
    %35 = vector.shape_cast %34 : vector<128xf32> to vector<128x1xf32>
    %36 = arith.maximumf %33, %35 : vector<128x1xf32>
    %37 = arith.subf %33, %36 : vector<128x1xf32>
    %38 = math.exp %37 : vector<128x1xf32>
    %39 = vector.broadcast %36 : vector<128x1xf32> to vector<128x128xf32>
    %40 = arith.subf %22, %39 : vector<128x128xf32>
    %41 = math.exp %40 : vector<128x128xf32>
    %cst_26 = arith.constant dense<0.000000e+00> : vector<128xf32>
    %42 = vector.multi_reduction <add>, %41, %cst_26 [1] : vector<128x128xf32> to vector<128xf32>
    %43 = vector.shape_cast %42 : vector<128xf32> to vector<128x1xf32>
    %c0_27 = arith.constant 0 : index
    %c0_28 = arith.constant 0 : index
    %44 = vector.load %arg6[%c0_27, %c0_28] : memref<128x1xf32, #tpu.memory_space<vmem>>, vector<128x1xf32>
    tpu.vector_store %arg6[%c0_27, %c0_28], %36 {strides = array<i32>} : memref<128x1xf32, #tpu.memory_space<vmem>>, vector<128x1xf32>,
    %45 = arith.cmpi ne, %arg0, %arg1 : i32
    %46 = arith.extui %45 : i1 to i32
    %c0_i32_29 = arith.constant 0 : i32
    %47 = arith.cmpi ne, %46, %c0_i32_29 : i32
    scf.if %47 {
      %c0_32 = arith.constant 0 : index
      %c0_33 = arith.constant 0 : index
      %54 = vector.load %arg7[%c0_32, %c0_33] : memref<128x1xf32, #tpu.memory_space<vmem>>, vector<128x1xf32>
      %55 = arith.mulf %38, %54 : vector<128x1xf32>
      %56 = arith.addf %55, %43 : vector<128x1xf32>
      %c0_34 = arith.constant 0 : index
      %c0_35 = arith.constant 0 : index
      %57 = vector.load %arg7[%c0_34, %c0_35] : memref<128x1xf32, #tpu.memory_space<vmem>>, vector<128x1xf32>
      tpu.vector_store %arg7[%c0_34, %c0_35], %56 {strides = array<i32>} : memref<128x1xf32, #tpu.memory_space<vmem>>, vector<128x1xf32>,
    } else {
    }
    %48 = arith.cmpi eq, %arg0, %arg1 : i32
    %49 = arith.extui %48 : i1 to i32
    %c0_i32_30 = arith.constant 0 : i32
    %50 = arith.cmpi ne, %49, %c0_i32_30 : i32
    scf.if %50 {
      %54 = tpu.iota {dimensions = array<i32: 0>} : vector<128x128xi32>
      %55 = tpu.iota {dimensions = array<i32: 1>} : vector<128x128xi32>
      %56 = arith.cmpi eq, %54, %55 : vector<128x128xi32>
      %cst_32 = arith.constant 0.000000e+00 : f32
      %57 = vector.broadcast %cst_32 : f32 to vector<128x128xf32>
      %58 = arith.select %56, %41, %57 : vector<128x128xi1>, vector<128x128xf32>
      %cst_33 = arith.constant dense<0.000000e+00> : vector<128xf32>
      %59 = vector.multi_reduction <add>, %58, %cst_33 [1] : vector<128x128xf32> to vector<128xf32>
      %60 = vector.shape_cast %59 : vector<128xf32> to vector<128x1xf32>
      %c0_34 = arith.constant 0 : index
      %c0_35 = arith.constant 0 : index
      %61 = vector.load %arg7[%c0_34, %c0_35] : memref<128x1xf32, #tpu.memory_space<vmem>>, vector<128x1xf32>
      %62 = arith.mulf %38, %61 : vector<128x1xf32>
      %63 = arith.subf %43, %60 : vector<128x1xf32>
      %64 = arith.addf %62, %63 : vector<128x1xf32>
      %c0_36 = arith.constant 0 : index
      %c0_37 = arith.constant 0 : index
      %65 = vector.load %arg7[%c0_36, %c0_37] : memref<128x1xf32, #tpu.memory_space<vmem>>, vector<128x1xf32>
      tpu.vector_store %arg7[%c0_36, %c0_37], %64 {strides = array<i32>} : memref<128x1xf32, #tpu.memory_space<vmem>>, vector<128x1xf32>,
    } else {
    }
    %c1_i32 = arith.constant 1 : i32
    %51 = arith.cmpi eq, %arg1, %c1_i32 : i32
    %52 = arith.extui %51 : i1 to i32
    %c0_i32_31 = arith.constant 0 : i32
    %53 = arith.cmpi ne, %52, %c0_i32_31 : i32
    scf.if %53 {
      %c0_32 = arith.constant 0 : index
      %c0_33 = arith.constant 0 : index
      %54 = vector.load %arg7[%c0_32, %c0_33] : memref<128x1xf32, #tpu.memory_space<vmem>>, vector<128x1xf32>
      %55 = math.log %54 : vector<128x1xf32>
      %c0_34 = arith.constant 0 : index
      %c0_35 = arith.constant 0 : index
      %56 = vector.load %arg6[%c0_34, %c0_35] : memref<128x1xf32, #tpu.memory_space<vmem>>, vector<128x1xf32>
      %57 = arith.addf %55, %56 : vector<128x1xf32>
      %cst_36 = arith.constant 1.000000e+00 : f32
      %58 = vector.broadcast %cst_36 : f32 to vector<128x1xf32>
      %59 = arith.mulf %58, %57 : vector<128x1xf32>
      %c0_37 = arith.constant 0 : index
      %c0_38 = arith.constant 0 : index
      %60 = vector.load %arg8[%c0_37, %c0_38] : memref<128x1xf32, #tpu.memory_space<vmem>>, vector<128x1xf32>
      %c0_39 = arith.constant 0 : index
      %c0_40 = arith.constant 0 : index
      %61 = vector.load %arg9[%c0_39, %c0_40] : memref<128x1xf32, #tpu.memory_space<vmem>>, vector<128x1xf32>
      %62 = arith.mulf %59, %61 : vector<128x1xf32>
      %63 = arith.subf %60, %62 : vector<128x1xf32>
      %c0_41 = arith.constant 0 : index
      %c0_42 = arith.constant 0 : index
      %64 = vector.load %arg9[%c0_41, %c0_42] : memref<128x1xf32, #tpu.memory_space<vmem>>, vector<128x1xf32>
      %cst_43 = arith.constant 1.000000e-07 : f32
      %65 = vector.broadcast %cst_43 : f32 to vector<128x1xf32>
      %66 = arith.addf %64, %65 : vector<128x1xf32>
      %67 = arith.divf %63, %66 : vector<128x1xf32>
      %c0_44 = arith.constant 0 : index
      %c0_45 = arith.constant 0 : index
      %68 = vector.load %arg5[%c0_44, %c0_45] : memref<128x1xf32, #tpu.memory_space<vmem>>, vector<128x1xf32>
      tpu.vector_store %arg5[%c0_44, %c0_45], %67 {strides = array<i32>} : memref<128x1xf32, #tpu.memory_space<vmem>>, vector<128x1xf32>,
    } else {
    }
    return
  }
  func.func @transform_0(%arg0: i32, %arg1: i32) -> (i32, i32) {
    %c0_i32 = arith.constant 0 : i32
    %c0_i32_0 = arith.constant 0 : i32
    return %arg0, %c0_i32 : i32, i32
  }
  func.func @transform_1(%arg0: i32, %arg1: i32) -> (i32, i32) {
    %c0_i32 = arith.constant 0 : i32
    %c0_i32_0 = arith.constant 0 : i32
    return %arg1, %c0_i32 : i32, i32
  }
  func.func @transform_2(%arg0: i32, %arg1: i32) -> (i32, i32) {
    %c0_i32 = arith.constant 0 : i32
    return %arg0, %arg1 : i32, i32
  }
  func.func @transform_3(%arg0: i32, %arg1: i32) -> (i32, i32) {
    %c0_i32 = arith.constant 0 : i32
    %c0_i32_0 = arith.constant 0 : i32
    return %arg0, %c0_i32 : i32, i32
  }
}

</mosaic_0001>

<llo_original>
// kernel: tpu_custom_call.1
$region0: #{tpu_custom_call.1}
  #allocation0 [shape = 'u32[]', space=smem, size = 0x4, offset = 0x4, fixed_abs, tag = 'smem constant byte address 0x4 - core index']
  #allocation1 [shape = 'u32[144,128]{1,0:T(1,128)}', space=vmem, size = 0x12000, scoped, tag = 'internal scratch']
  #allocation2 [shape = 'f32[128,1]{1,0:T(8,128)}', space=vmem, size = 0x10000, scoped, tag = 'scratch operand']
  #allocation3 [shape = 'f32[128,1]{1,0:T(8,128)}', space=vmem, size = 0x10000, scoped, tag = 'scratch operand']
  #allocation4 [shape = 'f32[128,1]{1,0:T(8,128)}', space=vmem, size = 0x10000, scoped, tag = 'scratch operand']
  #allocation5 [shape = 'f32[128,1]{1,0:T(8,128)}', space=vmem, size = 0x10000, scoped, tag = 'scratch operand']
  %s0 = inlined_call_operand.vmem [shape: f32[256,64], index: 0, kind: input, shape index: {}]
  %s1 = inlined_call_operand.vmem [shape: f32[256,64], index: 1, kind: input, shape index: {}]
  %s2 = inlined_call_operand.vmem [shape: f32[256,256], index: 2, kind: input, shape index: {}]
  %s3 = inlined_call_operand.vmem [shape: f32[256,1], index: 3, kind: output, shape index: {}]
  %s4 = sld [smem:[#allocation0]]
  $region99: #{tpu_custom_call.1} parent=0
    _
  %s6 = ssub.s32 1, %s4
  %s7 = scalar_select 0, %s6, %s4
  $region1: #{tpu_custom_call.1} parent=0
    #allocation6 [shape = 'u8[131072]{0}', space=vmem, size = 0x20000, scoped, tag = 'input window, operand 2']
    loop: start=0, step=1, limit=6
    $region2: #{tpu_custom_call.1} parent=1 // loop_pre_header
      _
    $region3: #{tpu_custom_call.1} parent=1 // loop_header
      %s9 = sphi 0, %s13
      %p10 = scmp.ge.s32.totalorder %s9, 6
      %s16 = sphi 0, %s28
      %s17 = sphi 0, %s24
      %s18 = sphi 0, %s16
      %s19 = sphi 0, %s17
      %s20 = sphi 0, %s18
      %s21 = sphi 0, %s19
      %s31 = sphi 0, %s33
      %s34 = sphi 0, %s31
      %s35 = sphi 0, %s34
      %s51 = sphi 0, %s35
      %s57 = sphi 0, %s59
      %s60 = sphi 0, %s57
      %s61 = sphi 0, %s60
      %s77 = sphi 0, %s61
      %s85 = sphi 0, %s87
      %s88 = sphi 0, %s85
      %s89 = sphi 0, %s88
      %s105 = sphi 0, %s89
      %s111 = sphi 0, %s113
      %s114 = sphi 0, %s111
      %s115 = sphi 0, %s114
      %s131 = sphi 0, %s115
    $region4: #{tpu_custom_call.1} parent=1 // loop_header_branch
      %12 = sbr.rel (%p10) target = $region8
    $region5: #{tpu_custom_call.1} parent=1 // loop_body
      %s14 = ssub.s32 %s9, 1
      %s15 = ssub.s32 %s9, 2
      %s22 = sadd.s32 1, %s17
      %p23 = scmp.ge.s32.totalorder %s22, 2
      %s24 = scalar_select %p23, 0, %s22
      %s25 = sadd.s32 1, %s16
      %s26 = scalar_select %p23, %s25, %s16
      %p27 = scmp.ge.s32.totalorder %s26, 2
      %s28 = scalar_select %p27, 0, %s26
      %s29 = ssub.s32 %s16, %s28
      %p30 = scmp.eq.s32.totalorder %s29, 0
      %s32 = sadd.s32 %s31, 1
      %s33 = scalar_select %p30, %s31, %s32
      %p36 = pneg %p30
      %p37 = scmp.eq.s32.totalorder %s9, 3
      %p38 = por %p36, %p37
      %p39 = scmp.ne.s32.totalorder %s31, %s34
      %p40 = scmp.eq.s32.totalorder %s9, 0
      %p41 = por %p39, %p40
      %p42 = scmp.ne.s32.totalorder %s31, %s34
      %p43 = scmp.eq.s32.totalorder %s14, 3
      %p44 = por %p42, %p43
      %p45 = scmp.ne.s32.totalorder %s34, %s35
      %p46 = scmp.eq.s32.totalorder %s14, 0
      %p47 = por %p45, %p46
      %p48 = scmp.ne.s32.totalorder %s34, %s35
      %p49 = scmp.eq.s32.totalorder %s15, 3
      %p50 = por %p48, %p49
      %p52 = scmp.ne.s32.totalorder %s35, %s51
      %p53 = scmp.eq.s32.totalorder %s15, 0
      %p54 = por %p52, %p53
      %s55 = ssub.s32 %s17, %s24
      %p56 = scmp.eq.s32.totalorder %s55, 0
      %s58 = sadd.s32 %s57, 1
      %s59 = scalar_select %p56, %s57, %s58
      %p62 = pneg %p56
      %p63 = scmp.eq.s32.totalorder %s9, 3
      %p64 = por %p62, %p63
      %p65 = scmp.ne.s32.totalorder %s57, %s60
      %p66 = scmp.eq.s32.totalorder %s9, 0
      %p67 = por %p65, %p66
      %p68 = scmp.ne.s32.totalorder %s57, %s60
      %p69 = scmp.eq.s32.totalorder %s14, 3
      %p70 = por %p68, %p69
      %p71 = scmp.ne.s32.totalorder %s60, %s61
      %p72 = scmp.eq.s32.totalorder %s14, 0
      %p73 = por %p71, %p72
      %p74 = scmp.ne.s32.totalorder %s60, %s61
      %p75 = scmp.eq.s32.totalorder %s15, 3
      %p76 = por %p74, %p75
      %p78 = scmp.ne.s32.totalorder %s61, %s77
      %p79 = scmp.eq.s32.totalorder %s15, 0
      %p80 = por %p78, %p79
      %s81 = ssub.s32 %s16, %s28
      %s82 = ssub.s32 %s17, %s24
      %s83 = sor.u32 %s81, %s82
      %p84 = scmp.eq.s32.totalorder %s83, 0
      %s86 = sadd.s32 %s85, 1
      %s87 = scalar_select %p84, %s85, %s86
      %p90 = pneg %p84
      %p91 = scmp.eq.s32.totalorder %s9, 3
      %p92 = por %p90, %p91
      %p93 = scmp.ne.s32.totalorder %s85, %s88
      %p94 = scmp.eq.s32.totalorder %s9, 0
      %p95 = por %p93, %p94
      %p96 = scmp.ne.s32.totalorder %s85, %s88
      %p97 = scmp.eq.s32.totalorder %s14, 3
      %p98 = por %p96, %p97
      %p99 = scmp.ne.s32.totalorder %s88, %s89
      %p100 = scmp.eq.s32.totalorder %s14, 0
      %p101 = por %p99, %p100
      %p102 = scmp.ne.s32.totalorder %s88, %s89
      %p103 = scmp.eq.s32.totalorder %s15, 3
      %p104 = por %p102, %p103
      %p106 = scmp.ne.s32.totalorder %s89, %s105
      %p107 = scmp.eq.s32.totalorder %s15, 0
      %p108 = por %p106, %p107
      %s109 = ssub.s32 %s16, %s28
      %p110 = scmp.eq.s32.totalorder %s109, 0
      %s112 = sadd.s32 %s111, 1
      %s113 = scalar_select %p110, %s111, %s112
      %p116 = pneg %p110
      %p117 = scmp.eq.s32.totalorder %s9, 3
      %p118 = por %p116, %p117
      %p119 = scmp.ne.s32.totalorder %s111, %s114
      %p120 = scmp.eq.s32.totalorder %s9, 0
      %p121 = por %p119, %p120
      %p122 = scmp.ne.s32.totalorder %s111, %s114
      %p123 = scmp.eq.s32.totalorder %s14, 3
      %p124 = por %p122, %p123
      %p125 = scmp.ne.s32.totalorder %s114, %s115
      %p126 = scmp.eq.s32.totalorder %s14, 0
      %p127 = por %p125, %p126
      %p128 = scmp.ne.s32.totalorder %s114, %s115
      %p129 = scmp.eq.s32.totalorder %s15, 3
      %p130 = por %p128, %p129
      %p132 = scmp.ne.s32.totalorder %s115, %s131
      %p133 = scmp.eq.s32.totalorder %s15, 0
      %p134 = por %p132, %p133
      %p135 = scmp.le.s32.totalorder 1, %s9
      %p136 = scmp.lt.s32.totalorder %s9, 5
      %p137 = pnand %p135, %p136
      %p138 = pneg %p137
      // Predicated region
      $region9: #{tpu_custom_call.1} parent=5 // pred_check
        _
      $region10: #{tpu_custom_call.1} parent=5 // pred_check_branch
        %140 = sbr.rel (%p137) target = $region12
      $region11: #{tpu_custom_call.1} parent=5 // pred_region
        %s141 = ssub.s32 %s9, 1
      $region12: #{tpu_custom_call.1} parent=5 // pred_fallthru
        _
      %p142 = scmp.lt.s32.totalorder %s9, 4
      // Predicated region
      $region13: #{tpu_custom_call.1} parent=5 // pred_check
        %p143 = pneg %p142
      $region14: #{tpu_custom_call.1} parent=5 // pred_check_branch
        %145 = sbr.rel (%p143) target = $region16
      $region15: #{tpu_custom_call.1} parent=5 // pred_region
        // Predicated region
        $region17: #{tpu_custom_call.1} parent=15 // pred_check
          %p146 = pneg %p41
        $region18: #{tpu_custom_call.1} parent=15 // pred_check_branch
          %148 = sbr.rel (%p146) target = $region20
        $region19: #{tpu_custom_call.1} parent=15 // pred_region
          %s149 = smul.u32 16, %s16
          %p150 = scmp.lt.s32.totalorder %s149, 31
          %s151 = scalar_select %p150, %s149, 31
          %s152 = smul.addr %s151, 8
          %s153 = scalar_lea.vmem %s0, %s152
          %s154 = smul.u32 16, %s16
        $region20: #{tpu_custom_call.1} parent=15 // pred_fallthru
          _
        // Predicated region
        $region21: #{tpu_custom_call.1} parent=15 // pred_check
          %p155 = pneg %p67
        $region22: #{tpu_custom_call.1} parent=15 // pred_check_branch
          %157 = sbr.rel (%p155) target = $region24
        $region23: #{tpu_custom_call.1} parent=15 // pred_region
          %s158 = smul.u32 16, %s17
          %p159 = scmp.lt.s32.totalorder %s158, 31
          %s160 = scalar_select %p159, %s158, 31
          %s161 = smul.addr %s160, 8
          %s162 = scalar_lea.vmem %s1, %s161
          %s163 = smul.u32 16, %s17
        $region24: #{tpu_custom_call.1} parent=15 // pred_fallthru
          _
        // Predicated region
        $region25: #{tpu_custom_call.1} parent=15 // pred_check
          %p164 = pneg %p95
        $region26: #{tpu_custom_call.1} parent=15 // pred_check_branch
          %166 = sbr.rel (%p164) target = $region28
        $region27: #{tpu_custom_call.1} parent=15 // pred_region
          %s167 = sand.u32 %s85, 1
          %s168 = sand.u32 %s85, 1
          %s169 = smul.addr %s168, 128
          %s170 = scalar_lea.vmem [#allocation6], %s169
          %s171 = smul.u32 16, %s16
          %s172 = smul.addr %s171, 2
          %s173 = sadd.s32 %s17, %s172
          %s174 = smul.addr %s173, 8
          %s175 = scalar_lea.vmem %s2, %s174
          // Predicated region
          $region29: #{tpu_custom_call.1} parent=27 // pred_check
            _
          $region30: #{tpu_custom_call.1} parent=27 // pred_check_branch
            %177 = sbr.rel (0) target = $region32
          $region31: #{tpu_custom_call.1} parent=27 // pred_region
            // Predicated region
            $region33: #{tpu_custom_call.1} parent=31 // pred_check
              _
            $region34: #{tpu_custom_call.1} parent=31 // pred_check_branch
              %179 = sbr.rel (0) target = $region36
            $region35: #{tpu_custom_call.1} parent=31 // pred_region
              // Predicated region
              $region48: #{tpu_custom_call.1} parent=35 // pred_check
                _
              $region49: #{tpu_custom_call.1} parent=35 // pred_check_branch
                %225 = sbr.rel (0) target = $region51
              $region50: #{tpu_custom_call.1} parent=35 // pred_region
                loop: start=0, step=1, limit=1
                $region52: #{tpu_custom_call.1} parent=50 // loop_pre_header
                  _
                $region53: #{tpu_custom_call.1} parent=50 // loop_header
                  %s227 = sphi 0, %s231
                  %p228 = scmp.ge.s32.totalorder %s227, 1
                  %s232 = sphi %s175, %s175
                  %s233 = sphi %s170, %s170
                $region54: #{tpu_custom_call.1} parent=50 // loop_header_branch
                  %230 = sbr.rel (%p228) target = $region58
                $region55: #{tpu_custom_call.1} parent=50 // loop_body
                  %v234 = vld [vmem:[%s232] sm:$0xff]
                  %235 = vst [vmem:[%s233] sm:$0xff] %v234
                  %v236 = vld [vmem:[%s232 + $0x10] sm:$0xff]
                  %237 = vst [vmem:[%s233 + $0x8] sm:$0xff] %v236
                  %v238 = vld [vmem:[%s232 + $0x20] sm:$0xff]
                  %239 = vst [vmem:[%s233 + $0x10] sm:$0xff] %v238
                  %v240 = vld [vmem:[%s232 + $0x30] sm:$0xff]
                  %241 = vst [vmem:[%s233 + $0x18] sm:$0xff] %v240
                  %v242 = vld [vmem:[%s232 + $0x40] sm:$0xff]
                  %243 = vst [vmem:[%s233 + $0x20] sm:$0xff] %v242
                  %v244 = vld [vmem:[%s232 + $0x50] sm:$0xff]
                  %245 = vst [vmem:[%s233 + $0x28] sm:$0xff] %v244
                  %v246 = vld [vmem:[%s232 + $0x60] sm:$0xff]
                  %247 = vst [vmem:[%s233 + $0x30] sm:$0xff] %v246
                  %v248 = vld [vmem:[%s232 + $0x70] sm:$0xff]
                  %249 = vst [vmem:[%s233 + $0x38] sm:$0xff] %v248
                  %v250 = vld [vmem:[%s232 + $0x80] sm:$0xff]
                  %251 = vst [vmem:[%s233 + $0x40] sm:$0xff] %v250
                  %v252 = vld [vmem:[%s232 + $0x90] sm:$0xff]
                  %253 = vst [vmem:[%s233 + $0x48] sm:$0xff] %v252
                  %v254 = vld [vmem:[%s232 + $0xa0] sm:$0xff]
                  %255 = vst [vmem:[%s233 + $0x50] sm:$0xff] %v254
                  %v256 = vld [vmem:[%s232 + $0xb0] sm:$0xff]
                  %257 = vst [vmem:[%s233 + $0x58] sm:$0xff] %v256
                  %v258 = vld [vmem:[%s232 + $0xc0] sm:$0xff]
                  %259 = vst [vmem:[%s233 + $0x60] sm:$0xff] %v258
                  %v260 = vld [vmem:[%s232 + $0xd0] sm:$0xff]
                  %261 = vst [vmem:[%s233 + $0x68] sm:$0xff] %v260
                  %v262 = vld [vmem:[%s232 + $0xe0] sm:$0xff]
                  %263 = vst [vmem:[%s233 + $0x70] sm:$0xff] %v262
                  %v264 = vld [vmem:[%s232 + $0xf0] sm:$0xff]
                  %265 = vst [vmem:[%s233 + $0x78] sm:$0xff] %v264
                $region56: #{tpu_custom_call.1} parent=50 // loop_footer
                  %s231 = sadd.s32 1, %s227
                $region57: #{tpu_custom_call.1} parent=50 // loop_footer_branch
                  %226 = sbr.rel target = $region53
                $region58: #{tpu_custom_call.1} parent=50 // loop_exit
                  _
              $region51: #{tpu_custom_call.1} parent=35 // pred_fallthru
                _
              // Predicated region
              $region59: #{tpu_custom_call.1} parent=35 // pred_check
                _
              $region60: #{tpu_custom_call.1} parent=35 // pred_check_branch
                %267 = sbr.rel target = $region62
              $region61: #{tpu_custom_call.1} parent=35 // pred_region
                _
              $region62: #{tpu_custom_call.1} parent=35 // pred_fallthru
                _
            $region36: #{tpu_custom_call.1} parent=31 // pred_fallthru
              _
            // Predicated region
            $region37: #{tpu_custom_call.1} parent=31 // pred_check
              _
            $region38: #{tpu_custom_call.1} parent=31 // pred_check_branch
              %181 = sbr.rel target = $region40
            $region39: #{tpu_custom_call.1} parent=31 // pred_region
              %s183 = ssub.s32 256, 1
              loop: start=0, step=1, limit=1
              $region41: #{tpu_custom_call.1} parent=39 // loop_pre_header
                _
              $region42: #{tpu_custom_call.1} parent=39 // loop_header
                %s185 = sphi 0, %s189
                %p186 = scmp.ge.s32.totalorder %s185, 1
                %s190 = sphi %s175, %s175
                %s191 = sphi %s170, %s170
              $region43: #{tpu_custom_call.1} parent=39 // loop_header_branch
                %188 = sbr.rel (%p186) target = $region47
              $region44: #{tpu_custom_call.1} parent=39 // loop_body
                %v192 = vld [vmem:[%s190] sm:%s183]
                %193 = vst [vmem:[%s191] sm:%s183] %v192
                %v194 = vld [vmem:[%s190 + $0x10] sm:%s183]
                %195 = vst [vmem:[%s191 + $0x8] sm:%s183] %v194
                %v196 = vld [vmem:[%s190 + $0x20] sm:%s183]
                %197 = vst [vmem:[%s191 + $0x10] sm:%s183] %v196
                %v198 = vld [vmem:[%s190 + $0x30] sm:%s183]
                %199 = vst [vmem:[%s191 + $0x18] sm:%s183] %v198
                %v200 = vld [vmem:[%s190 + $0x40] sm:%s183]
                %201 = vst [vmem:[%s191 + $0x20] sm:%s183] %v200
                %v202 = vld [vmem:[%s190 + $0x50] sm:%s183]
                %203 = vst [vmem:[%s191 + $0x28] sm:%s183] %v202
                %v204 = vld [vmem:[%s190 + $0x60] sm:%s183]
                %205 = vst [vmem:[%s191 + $0x30] sm:%s183] %v204
                %v206 = vld [vmem:[%s190 + $0x70] sm:%s183]
                %207 = vst [vmem:[%s191 + $0x38] sm:%s183] %v206
                %v208 = vld [vmem:[%s190 + $0x80] sm:%s183]
                %209 = vst [vmem:[%s191 + $0x40] sm:%s183] %v208
                %v210 = vld [vmem:[%s190 + $0x90] sm:%s183]
                %211 = vst [vmem:[%s191 + $0x48] sm:%s183] %v210
                %v212 = vld [vmem:[%s190 + $0xa0] sm:%s183]
                %213 = vst [vmem:[%s191 + $0x50] sm:%s183] %v212
                %v214 = vld [vmem:[%s190 + $0xb0] sm:%s183]
                %215 = vst [vmem:[%s191 + $0x58] sm:%s183] %v214
                %v216 = vld [vmem:[%s190 + $0xc0] sm:%s183]
                %217 = vst [vmem:[%s191 + $0x60] sm:%s183] %v216
                %v218 = vld [vmem:[%s190 + $0xd0] sm:%s183]
                %219 = vst [vmem:[%s191 + $0x68] sm:%s183] %v218
                %v220 = vld [vmem:[%s190 + $0xe0] sm:%s183]
                %221 = vst [vmem:[%s191 + $0x70] sm:%s183] %v220
                %v222 = vld [vmem:[%s190 + $0xf0] sm:%s183]
                %223 = vst [vmem:[%s191 + $0x78] sm:%s183] %v222
              $region45: #{tpu_custom_call.1} parent=39 // loop_footer
                %s189 = sadd.s32 1, %s185
              $region46: #{tpu_custom_call.1} parent=39 // loop_footer_branch
                %184 = sbr.rel target = $region42
              $region47: #{tpu_custom_call.1} parent=39 // loop_exit
                _
            $region40: #{tpu_custom_call.1} parent=31 // pred_fallthru
              _
          $region32: #{tpu_custom_call.1} parent=27 // pred_fallthru
            _
          %268 = vnop
        $region28: #{tpu_custom_call.1} parent=15 // pred_fallthru
          _
      $region16: #{tpu_custom_call.1} parent=5 // pred_fallthru
        _
      %p269 = scmp.le.s32.totalorder 1, %s9
      %p270 = scmp.lt.s32.totalorder %s9, 5
      %p271 = pnand %p269, %p270
      %p272 = pneg %p271
      // Predicated region
      $region63: #{tpu_custom_call.1} parent=5 // pred_check
        _
      $region64: #{tpu_custom_call.1} parent=5 // pred_check_branch
        %274 = sbr.rel (%p271) target = $region66
      $region65: #{tpu_custom_call.1} parent=5 // pred_region
        %s275 = ssub.s32 %s9, 1
        %s276 = sand.u32 %s88, 1
        %s277 = sand.u32 %s88, 1
        %s278 = smul.addr %s277, 128
        %s279 = scalar_lea.vmem [#allocation6], %s278
        // Predicated region
        $region67: #{tpu_custom_call.1} parent=65 // pred_check
          %p280 = pneg %p101
        $region68: #{tpu_custom_call.1} parent=65 // pred_check_branch
          %282 = sbr.rel (%p280) target = $region70
        $region69: #{tpu_custom_call.1} parent=65 // pred_region
          _
        $region70: #{tpu_custom_call.1} parent=65 // pred_fallthru
          _
        %s283 = smul.u32 16, %s18
        %p284 = scmp.lt.s32.totalorder %s283, 31
        %s285 = scalar_select %p284, %s283, 31
        %s286 = smul.addr %s285, 8
        %s287 = scalar_lea.vmem %s0, %s286
        %p288 = pneg %p47
        %p289 = pneg %p44
        %s290 = smul.u32 16, %s19
        %p291 = scmp.lt.s32.totalorder %s290, 31
        %s292 = scalar_select %p291, %s290, 31
        %s293 = smul.addr %s292, 8
        %s294 = scalar_lea.vmem %s1, %s293
        %p295 = pneg %p73
        %p296 = pneg %p70
        %s297 = sand.u32 %s88, 1
        %s298 = sand.u32 %s88, 1
        %s299 = smul.addr %s298, 128
        %s300 = scalar_lea.vmem [#allocation6], %s299
        %p301 = pneg %p101
        %p302 = pneg %p98
        %p303 = pneg %p127
        %p304 = pneg %p124
        %s305 = smul.u32 16, %s18
        %p306 = scmp.lt.s32.totalorder %s305, 31
        %s307 = scalar_select %p306, %s305, 31
        %s308 = smul.addr %s307, 8
        %s309 = scalar_lea.vmem %s3, %s308
        %s310 = smul.u32 16, %s18
        %p311 = scmp.lt.s32.totalorder %s310, 31
        %s312 = scalar_select %p311, %s310, 31
        %s313 = smul.addr %s312, 8
        %s314 = scalar_lea.vmem %s0, %s313
        %s315 = smul.u32 16, %s18
        %s316 = smul.u32 16, %s19
        %p317 = scmp.lt.s32.totalorder %s316, 31
        %s318 = scalar_select %p317, %s316, 31
        %s319 = smul.addr %s318, 8
        %s320 = scalar_lea.vmem %s1, %s319
        %s321 = smul.u32 16, %s19
        %s322 = smul.u32 16, %s18
        %s323 = smul.u32 16, %s18
        %p324 = scmp.lt.s32.totalorder %s323, 31
        %s325 = scalar_select %p324, %s323, 31
        %s326 = smul.addr %s325, 8
        %s327 = scalar_lea.vmem %s3, %s326
        %s328 = smul.u32 16, %s18
        %v329 = vld [vmem:[%s279] sm:$0xff]
        %v330 = vld [vmem:[%s279 + $0x8] sm:$0xff]
        %v331 = vld [vmem:[%s279 + $0x10] sm:$0xff]
        %v332 = vld [vmem:[%s279 + $0x18] sm:$0xff]
        %v333 = vld [vmem:[%s279 + $0x20] sm:$0xff]
        %v334 = vld [vmem:[%s279 + $0x28] sm:$0xff]
        %v335 = vld [vmem:[%s279 + $0x30] sm:$0xff]
        %v336 = vld [vmem:[%s279 + $0x38] sm:$0xff]
        %v337 = vld [vmem:[%s279 + $0x40] sm:$0xff]
        %v338 = vld [vmem:[%s279 + $0x48] sm:$0xff]
        %v339 = vld [vmem:[%s279 + $0x50] sm:$0xff]
        %v340 = vld [vmem:[%s279 + $0x58] sm:$0xff]
        %v341 = vld [vmem:[%s279 + $0x60] sm:$0xff]
        %v342 = vld [vmem:[%s279 + $0x68] sm:$0xff]
        %v343 = vld [vmem:[%s279 + $0x70] sm:$0xff]
        %v344 = vld [vmem:[%s279 + $0x78] sm:$0xff]
        %v345 = vld [vmem:[%s314] sm:$0xff]
        %v346 = vld [vmem:[%s314 + $0x8] sm:$0xff]
        %v347 = vld [vmem:[%s314 + $0x10] sm:$0xff]
        %v348 = vld [vmem:[%s314 + $0x18] sm:$0xff]
        %v349 = vld [vmem:[%s314 + $0x20] sm:$0xff]
        %v350 = vld [vmem:[%s314 + $0x28] sm:$0xff]
        %v351 = vld [vmem:[%s314 + $0x30] sm:$0xff]
        %v352 = vld [vmem:[%s314 + $0x38] sm:$0xff]
        %v353 = vld [vmem:[%s314 + $0x40] sm:$0xff]
        %v354 = vld [vmem:[%s314 + $0x48] sm:$0xff]
        %v355 = vld [vmem:[%s314 + $0x50] sm:$0xff]
        %v356 = vld [vmem:[%s314 + $0x58] sm:$0xff]
        %v357 = vld [vmem:[%s314 + $0x60] sm:$0xff]
        %v358 = vld [vmem:[%s314 + $0x68] sm:$0xff]
        %v359 = vld [vmem:[%s314 + $0x70] sm:$0xff]
        %v360 = vld [vmem:[%s314 + $0x78] sm:$0xff]
        %v361 = vmul.f32 %v345, 14.285714
        %v362 = vmul.f32 %v346, 14.285714
        %v363 = vmul.f32 %v347, 14.285714
        %v364 = vmul.f32 %v348, 14.285714
        %v365 = vmul.f32 %v349, 14.285714
        %v366 = vmul.f32 %v350, 14.285714
        %v367 = vmul.f32 %v351, 14.285714
        %v368 = vmul.f32 %v352, 14.285714
        %v369 = vmul.f32 %v353, 14.285714
        %v370 = vmul.f32 %v354, 14.285714
        %v371 = vmul.f32 %v355, 14.285714
        %v372 = vmul.f32 %v356, 14.285714
        %v373 = vmul.f32 %v357, 14.285714
        %v374 = vmul.f32 %v358, 14.285714
        %v375 = vmul.f32 %v359, 14.285714
        %v376 = vmul.f32 %v360, 14.285714
        %v377 = vld [vmem:[%s320] sm:$0xff]
        %v378 = vld [vmem:[%s320 + $0x8] sm:$0xff]
        %v379 = vld [vmem:[%s320 + $0x10] sm:$0xff]
        %v380 = vld [vmem:[%s320 + $0x18] sm:$0xff]
        %v381 = vld [vmem:[%s320 + $0x20] sm:$0xff]
        %v382 = vld [vmem:[%s320 + $0x28] sm:$0xff]
        %v383 = vld [vmem:[%s320 + $0x30] sm:$0xff]
        %v384 = vld [vmem:[%s320 + $0x38] sm:$0xff]
        %v385 = vld [vmem:[%s320 + $0x40] sm:$0xff]
        %v386 = vld [vmem:[%s320 + $0x48] sm:$0xff]
        %v387 = vld [vmem:[%s320 + $0x50] sm:$0xff]
        %v388 = vld [vmem:[%s320 + $0x58] sm:$0xff]
        %v389 = vld [vmem:[%s320 + $0x60] sm:$0xff]
        %v390 = vld [vmem:[%s320 + $0x68] sm:$0xff]
        %v391 = vld [vmem:[%s320 + $0x70] sm:$0xff]
        %v392 = vld [vmem:[%s320 + $0x78] sm:$0xff]
        %vm393 = vcmask 523264
        %v395 = vsel %vm393, %v361, 0
        %v398 = vsel %vm393, %v362, 0
        %v401 = vsel %vm393, %v363, 0
        %v404 = vsel %vm393, %v364, 0
        %v407 = vsel %vm393, %v365, 0
        %v410 = vsel %vm393, %v366, 0
        %v413 = vsel %vm393, %v367, 0
        %v416 = vsel %vm393, %v368, 0
        %v419 = vsel %vm393, %v369, 0
        %v422 = vsel %vm393, %v370, 0
        %v425 = vsel %vm393, %v371, 0
        %v428 = vsel %vm393, %v372, 0
        %v431 = vsel %vm393, %v373, 0
        %v434 = vsel %vm393, %v374, 0
        %v437 = vsel %vm393, %v375, 0
        %v440 = vsel %vm393, %v376, 0
        %v443 = vsel %vm393, %v377, 0
        %v446 = vsel %vm393, %v378, 0
        %v449 = vsel %vm393, %v379, 0
        %v452 = vsel %vm393, %v380, 0
        %v455 = vsel %vm393, %v381, 0
        %v458 = vsel %vm393, %v382, 0
        %v461 = vsel %vm393, %v383, 0
        %v464 = vsel %vm393, %v384, 0
        %v467 = vsel %vm393, %v385, 0
        %v470 = vsel %vm393, %v386, 0
        %v473 = vsel %vm393, %v387, 0
        %v476 = vsel %vm393, %v388, 0
        %v479 = vsel %vm393, %v389, 0
        %v482 = vsel %vm393, %v390, 0
        %v485 = vsel %vm393, %v391, 0
        %v488 = vsel %vm393, %v392, 0
        %490 = vmatprep.subr.mxu0 0.0
        %491 = vmatpush1.xpose.msra.mxu0 %v488
        %492 = vmatprep.subr.mxu0 0.0
        %493 = vmatpush1.xpose.msra.mxu0 %v485
        %494 = vmatprep.subr.mxu0 0.0
        %495 = vmatpush1.xpose.msra.mxu0 %v482
        %496 = vmatprep.subr.mxu0 0.0
        %497 = vmatpush1.xpose.msra.mxu0 %v479
        %498 = vmatprep.subr.mxu0 0.0
        %499 = vmatpush1.xpose.msra.mxu0 %v476
        %500 = vmatprep.subr.mxu0 0.0
        %501 = vmatpush1.xpose.msra.mxu0 %v473
        %502 = vmatprep.subr.mxu0 0.0
        %503 = vmatpush1.xpose.msra.mxu0 %v470
        %504 = vmatprep.subr.mxu0 0.0
        %505 = vmatpush1.xpose.msra.mxu0 %v467
        %506 = vmatprep.subr.mxu0 0.0
        %507 = vmatpush1.xpose.msra.mxu0 %v464
        %508 = vmatprep.subr.mxu0 0.0
        %509 = vmatpush1.xpose.msra.mxu0 %v461
        %510 = vmatprep.subr.mxu0 0.0
        %511 = vmatpush1.xpose.msra.mxu0 %v458
        %512 = vmatprep.subr.mxu0 0.0
        %513 = vmatpush1.xpose.msra.mxu0 %v455
        %514 = vmatprep.subr.mxu0 0.0
        %515 = vmatpush1.xpose.msra.mxu0 %v452
        %516 = vmatprep.subr.mxu0 0.0
        %517 = vmatpush1.xpose.msra.mxu0 %v449
        %518 = vmatprep.subr.mxu0 0.0
        %519 = vmatpush1.xpose.msra.mxu0 %v446
        %520 = vmatprep.subr.mxu0 0.0
        %521 = vmatpush1.xpose.msra.mxu0 %v443
        %522 = vmatprep.subr.mxu0 0.0
        %523 = vmatpush2.xpose.msra.mxu0 0.0
        %524 = vmatprep.subr.mxu0 0.0
        %525 = vmatpush2.xpose.msra.mxu0 0.0
        %526 = vmatprep.subr.mxu0 0.0
        %527 = vmatpush2.xpose.msra.mxu0 0.0
        %528 = vmatprep.subr.mxu0 0.0
        %529 = vmatpush2.xpose.msra.mxu0 0.0
        %530 = vmatprep.subr.mxu0 0.0
        %531 = vmatpush2.xpose.msra.mxu0 0.0
        %532 = vmatprep.subr.mxu0 0.0
        %533 = vmatpush2.xpose.msra.mxu0 0.0
        %534 = vmatprep.subr.mxu0 0.0
        %535 = vmatpush2.xpose.msra.mxu0 0.0
        %536 = vmatprep.subr.mxu0 0.0
        %537 = vmatpush2.xpose.msra.mxu0 0.0
        %538 = vmatprep.subr.mxu0 0.0
        %539 = vmatpush2.xpose.msra.mxu0 0.0
        %540 = vmatprep.subr.mxu0 0.0
        %541 = vmatpush2.xpose.msra.mxu0 0.0
        %542 = vmatprep.subr.mxu0 0.0
        %543 = vmatpush2.xpose.msra.mxu0 0.0
        %544 = vmatprep.subr.mxu0 0.0
        %545 = vmatpush2.xpose.msra.mxu0 0.0
        %546 = vmatprep.subr.mxu0 0.0
        %547 = vmatpush2.xpose.msra.mxu0 0.0
        %548 = vmatprep.subr.mxu0 0.0
        %549 = vmatpush2.xpose.msra.mxu0 0.0
        %550 = vmatprep.subr.mxu0 0.0
        %551 = vmatpush2.xpose.msra.mxu0 0.0
        %552 = vmatprep.subr.mxu0 0.0
        %553 = vmatpush2.xpose.msra.mxu0 0.0
        %554 = vmatprep.mubr.f32.mxu0 0.0
        %555 = vmatmul.mubr.f32.gmra.mxu0 %v395
        %v556 = vpop.f32.mrf.mxu0
        %v557 = vadd.f32 0.0, %v556
        %v558 = vpop.f32.mrf.mxu0
        %559 = vmatprep.mubr.f32.mxu0 0.0
        %560 = vmatmul.mubr.f32.gmra.mxu0 %v398
        %v561 = vpop.f32.mrf.mxu0
        %v562 = vadd.f32 0.0, %v561
        %v563 = vpop.f32.mrf.mxu0
        %564 = vmatprep.mubr.f32.mxu0 0.0
        %565 = vmatmul.mubr.f32.gmra.mxu0 %v401
        %v566 = vpop.f32.mrf.mxu0
        %v567 = vadd.f32 0.0, %v566
        %v568 = vpop.f32.mrf.mxu0
        %569 = vmatprep.mubr.f32.mxu0 0.0
        %570 = vmatmul.mubr.f32.gmra.mxu0 %v404
        %v571 = vpop.f32.mrf.mxu0
        %v572 = vadd.f32 0.0, %v571
        %v573 = vpop.f32.mrf.mxu0
        %574 = vmatprep.mubr.f32.mxu0 0.0
        %575 = vmatmul.mubr.f32.gmra.mxu0 %v407
        %v576 = vpop.f32.mrf.mxu0
        %v577 = vadd.f32 0.0, %v576
        %v578 = vpop.f32.mrf.mxu0
        %579 = vmatprep.mubr.f32.mxu0 0.0
        %580 = vmatmul.mubr.f32.gmra.mxu0 %v410
        %v581 = vpop.f32.mrf.mxu0
        %v582 = vadd.f32 0.0, %v581
        %v583 = vpop.f32.mrf.mxu0
        %584 = vmatprep.mubr.f32.mxu0 0.0
        %585 = vmatmul.mubr.f32.gmra.mxu0 %v413
        %v586 = vpop.f32.mrf.mxu0
        %v587 = vadd.f32 0.0, %v586
        %v588 = vpop.f32.mrf.mxu0
        %589 = vmatprep.mubr.f32.mxu0 0.0
        %590 = vmatmul.mubr.f32.gmra.mxu0 %v416
        %v591 = vpop.f32.mrf.mxu0
        %v592 = vadd.f32 0.0, %v591
        %v593 = vpop.f32.mrf.mxu0
        %594 = vmatprep.mubr.f32.mxu0 0.0
        %595 = vmatmul.mubr.f32.gmra.mxu0 %v419
        %v596 = vpop.f32.mrf.mxu0
        %v597 = vadd.f32 0.0, %v596
        %v598 = vpop.f32.mrf.mxu0
        %599 = vmatprep.mubr.f32.mxu0 0.0
        %600 = vmatmul.mubr.f32.gmra.mxu0 %v422
        %v601 = vpop.f32.mrf.mxu0
        %v602 = vadd.f32 0.0, %v601
        %v603 = vpop.f32.mrf.mxu0
        %604 = vmatprep.mubr.f32.mxu0 0.0
        %605 = vmatmul.mubr.f32.gmra.mxu0 %v425
        %v606 = vpop.f32.mrf.mxu0
        %v607 = vadd.f32 0.0, %v606
        %v608 = vpop.f32.mrf.mxu0
        %609 = vmatprep.mubr.f32.mxu0 0.0
        %610 = vmatmul.mubr.f32.gmra.mxu0 %v428
        %v611 = vpop.f32.mrf.mxu0
        %v612 = vadd.f32 0.0, %v611
        %v613 = vpop.f32.mrf.mxu0
        %614 = vmatprep.mubr.f32.mxu0 0.0
        %615 = vmatmul.mubr.f32.gmra.mxu0 %v431
        %v616 = vpop.f32.mrf.mxu0
        %v617 = vadd.f32 0.0, %v616
        %v618 = vpop.f32.mrf.mxu0
        %619 = vmatprep.mubr.f32.mxu0 0.0
        %620 = vmatmul.mubr.f32.gmra.mxu0 %v434
        %v621 = vpop.f32.mrf.mxu0
        %v622 = vadd.f32 0.0, %v621
        %v623 = vpop.f32.mrf.mxu0
        %624 = vmatprep.mubr.f32.mxu0 0.0
        %625 = vmatmul.mubr.f32.gmra.mxu0 %v437
        %v626 = vpop.f32.mrf.mxu0
        %v627 = vadd.f32 0.0, %v626
        %v628 = vpop.f32.mrf.mxu0
        %629 = vmatprep.mubr.f32.mxu0 0.0
        %630 = vmatmul.mubr.f32.gmra.mxu0 %v440
        %v631 = vpop.f32.mrf.mxu0
        %v632 = vadd.f32 0.0, %v631
        %v633 = vpop.f32.mrf.mxu0
        %634 = vdwg.mxu0
        %p635 = scmp.eq.s32.totalorder %s19, 0
        // Predicated region
        $region71: #{tpu_custom_call.1} parent=65 // pred_check
          %p636 = pneg %p635
        $region72: #{tpu_custom_call.1} parent=65 // pred_check_branch
          %638 = sbr.rel (%p636) target = $region74
        $region73: #{tpu_custom_call.1} parent=65 // pred_region
          %vm639 = vcmask 7168
          %640 = vst.msk [vmem:[#allocation2] sm:$0xff] %vm639, -inf
          %641 = vst.msk [vmem:[#allocation2 + $0x8] sm:$0xff] %vm639, -inf
          %642 = vst.msk [vmem:[#allocation2 + $0x10] sm:$0xff] %vm639, -inf
          %643 = vst.msk [vmem:[#allocation2 + $0x18] sm:$0xff] %vm639, -inf
          %644 = vst.msk [vmem:[#allocation2 + $0x20] sm:$0xff] %vm639, -inf
          %645 = vst.msk [vmem:[#allocation2 + $0x28] sm:$0xff] %vm639, -inf
          %646 = vst.msk [vmem:[#allocation2 + $0x30] sm:$0xff] %vm639, -inf
          %647 = vst.msk [vmem:[#allocation2 + $0x38] sm:$0xff] %vm639, -inf
          %648 = vst.msk [vmem:[#allocation2 + $0x40] sm:$0xff] %vm639, -inf
          %649 = vst.msk [vmem:[#allocation2 + $0x48] sm:$0xff] %vm639, -inf
          %650 = vst.msk [vmem:[#allocation2 + $0x50] sm:$0xff] %vm639, -inf
          %651 = vst.msk [vmem:[#allocation2 + $0x58] sm:$0xff] %vm639, -inf
          %652 = vst.msk [vmem:[#allocation2 + $0x60] sm:$0xff] %vm639, -inf
          %653 = vst.msk [vmem:[#allocation2 + $0x68] sm:$0xff] %vm639, -inf
          %654 = vst.msk [vmem:[#allocation2 + $0x70] sm:$0xff] %vm639, -inf
          %655 = vst.msk [vmem:[#allocation2 + $0x78] sm:$0xff] %vm639, -inf
          %656 = vst.msk [vmem:[#allocation3] sm:$0xff] %vm639, 0.0
          %657 = vst.msk [vmem:[#allocation3 + $0x8] sm:$0xff] %vm639, 0.0
          %658 = vst.msk [vmem:[#allocation3 + $0x10] sm:$0xff] %vm639, 0.0
          %659 = vst.msk [vmem:[#allocation3 + $0x18] sm:$0xff] %vm639, 0.0
          %660 = vst.msk [vmem:[#allocation3 + $0x20] sm:$0xff] %vm639, 0.0
          %661 = vst.msk [vmem:[#allocation3 + $0x28] sm:$0xff] %vm639, 0.0
          %662 = vst.msk [vmem:[#allocation3 + $0x30] sm:$0xff] %vm639, 0.0
          %663 = vst.msk [vmem:[#allocation3 + $0x38] sm:$0xff] %vm639, 0.0
          %664 = vst.msk [vmem:[#allocation3 + $0x40] sm:$0xff] %vm639, 0.0
          %665 = vst.msk [vmem:[#allocation3 + $0x48] sm:$0xff] %vm639, 0.0
          %666 = vst.msk [vmem:[#allocation3 + $0x50] sm:$0xff] %vm639, 0.0
          %667 = vst.msk [vmem:[#allocation3 + $0x58] sm:$0xff] %vm639, 0.0
          %668 = vst.msk [vmem:[#allocation3 + $0x60] sm:$0xff] %vm639, 0.0
          %669 = vst.msk [vmem:[#allocation3 + $0x68] sm:$0xff] %vm639, 0.0
          %670 = vst.msk [vmem:[#allocation3 + $0x70] sm:$0xff] %vm639, 0.0
          %671 = vst.msk [vmem:[#allocation3 + $0x78] sm:$0xff] %vm639, 0.0
          %672 = vst.msk [vmem:[#allocation4] sm:$0xff] %vm639, 0.0
          %673 = vst.msk [vmem:[#allocation4 + $0x8] sm:$0xff] %vm639, 0.0
          %674 = vst.msk [vmem:[#allocation4 + $0x10] sm:$0xff] %vm639, 0.0
          %675 = vst.msk [vmem:[#allocation4 + $0x18] sm:$0xff] %vm639, 0.0
          %676 = vst.msk [vmem:[#allocation4 + $0x20] sm:$0xff] %vm639, 0.0
          %677 = vst.msk [vmem:[#allocation4 + $0x28] sm:$0xff] %vm639, 0.0
          %678 = vst.msk [vmem:[#allocation4 + $0x30] sm:$0xff] %vm639, 0.0
          %679 = vst.msk [vmem:[#allocation4 + $0x38] sm:$0xff] %vm639, 0.0
          %680 = vst.msk [vmem:[#allocation4 + $0x40] sm:$0xff] %vm639, 0.0
          %681 = vst.msk [vmem:[#allocation4 + $0x48] sm:$0xff] %vm639, 0.0
          %682 = vst.msk [vmem:[#allocation4 + $0x50] sm:$0xff] %vm639, 0.0
          %683 = vst.msk [vmem:[#allocation4 + $0x58] sm:$0xff] %vm639, 0.0
          %684 = vst.msk [vmem:[#allocation4 + $0x60] sm:$0xff] %vm639, 0.0
          %685 = vst.msk [vmem:[#allocation4 + $0x68] sm:$0xff] %vm639, 0.0
          %686 = vst.msk [vmem:[#allocation4 + $0x70] sm:$0xff] %vm639, 0.0
          %687 = vst.msk [vmem:[#allocation4 + $0x78] sm:$0xff] %vm639, 0.0
          %688 = vst.msk [vmem:[#allocation5] sm:$0xff] %vm639, 0.0
          %689 = vst.msk [vmem:[#allocation5 + $0x8] sm:$0xff] %vm639, 0.0
          %690 = vst.msk [vmem:[#allocation5 + $0x10] sm:$0xff] %vm639, 0.0
          %691 = vst.msk [vmem:[#allocation5 + $0x18] sm:$0xff] %vm639, 0.0
          %692 = vst.msk [vmem:[#allocation5 + $0x20] sm:$0xff] %vm639, 0.0
          %693 = vst.msk [vmem:[#allocation5 + $0x28] sm:$0xff] %vm639, 0.0
          %694 = vst.msk [vmem:[#allocation5 + $0x30] sm:$0xff] %vm639, 0.0
          %695 = vst.msk [vmem:[#allocation5 + $0x38] sm:$0xff] %vm639, 0.0
          %696 = vst.msk [vmem:[#allocation5 + $0x40] sm:$0xff] %vm639, 0.0
          %697 = vst.msk [vmem:[#allocation5 + $0x48] sm:$0xff] %vm639, 0.0
          %698 = vst.msk [vmem:[#allocation5 + $0x50] sm:$0xff] %vm639, 0.0
          %699 = vst.msk [vmem:[#allocation5 + $0x58] sm:$0xff] %vm639, 0.0
          %700 = vst.msk [vmem:[#allocation5 + $0x60] sm:$0xff] %vm639, 0.0
          %701 = vst.msk [vmem:[#allocation5 + $0x68] sm:$0xff] %vm639, 0.0
          %702 = vst.msk [vmem:[#allocation5 + $0x70] sm:$0xff] %vm639, 0.0
          %703 = vst.msk [vmem:[#allocation5 + $0x78] sm:$0xff] %vm639, 0.0
        $region74: #{tpu_custom_call.1} parent=65 // pred_fallthru
          _
        %v704 = vmax.f32 %v329, 0.0
        %v705 = vmax.f32 %v330, 0.0
        %v706 = vmax.f32 %v331, 0.0
        %v707 = vmax.f32 %v332, 0.0
        %v708 = vmax.f32 %v333, 0.0
        %v709 = vmax.f32 %v334, 0.0
        %v710 = vmax.f32 %v335, 0.0
        %v711 = vmax.f32 %v336, 0.0
        %v712 = vmax.f32 %v337, 0.0
        %v713 = vmax.f32 %v338, 0.0
        %v714 = vmax.f32 %v339, 0.0
        %v715 = vmax.f32 %v340, 0.0
        %v716 = vmax.f32 %v341, 0.0
        %v717 = vmax.f32 %v342, 0.0
        %v718 = vmax.f32 %v343, 0.0
        %v719 = vmax.f32 %v344, 0.0
        %vm720 = vcmp.gt.f32.partialorder %v704, 0.0
        %vm721 = vcmp.gt.f32.partialorder %v705, 0.0
        %vm722 = vcmp.gt.f32.partialorder %v706, 0.0
        %vm723 = vcmp.gt.f32.partialorder %v707, 0.0
        %vm724 = vcmp.gt.f32.partialorder %v708, 0.0
        %vm725 = vcmp.gt.f32.partialorder %v709, 0.0
        %vm726 = vcmp.gt.f32.partialorder %v710, 0.0
        %vm727 = vcmp.gt.f32.partialorder %v711, 0.0
        %vm728 = vcmp.gt.f32.partialorder %v712, 0.0
        %vm729 = vcmp.gt.f32.partialorder %v713, 0.0
        %vm730 = vcmp.gt.f32.partialorder %v714, 0.0
        %vm731 = vcmp.gt.f32.partialorder %v715, 0.0
        %vm732 = vcmp.gt.f32.partialorder %v716, 0.0
        %vm733 = vcmp.gt.f32.partialorder %v717, 0.0
        %vm734 = vcmp.gt.f32.partialorder %v718, 0.0
        %vm735 = vcmp.gt.f32.partialorder %v719, 0.0
        %v736 = vsel %vm720, 1.0, 0.0
        %v737 = vsel %vm721, 1.0, 0.0
        %v738 = vsel %vm722, 1.0, 0.0
        %v739 = vsel %vm723, 1.0, 0.0
        %v740 = vsel %vm724, 1.0, 0.0
        %v741 = vsel %vm725, 1.0, 0.0
        %v742 = vsel %vm726, 1.0, 0.0
        %v743 = vsel %vm727, 1.0, 0.0
        %v744 = vsel %vm728, 1.0, 0.0
        %v745 = vsel %vm729, 1.0, 0.0
        %v746 = vsel %vm730, 1.0, 0.0
        %v747 = vsel %vm731, 1.0, 0.0
        %v748 = vsel %vm732, 1.0, 0.0
        %v749 = vsel %vm733, 1.0, 0.0
        %v750 = vsel %vm734, 1.0, 0.0
        %v751 = vsel %vm735, 1.0, 0.0
        %v752 = vand.u32 2147483647, %v329
        %v753 = vand.u32 2147483647, %v330
        %v754 = vand.u32 2147483647, %v331
        %v755 = vand.u32 2147483647, %v332
        %v756 = vand.u32 2147483647, %v333
        %v757 = vand.u32 2147483647, %v334
        %v758 = vand.u32 2147483647, %v335
        %v759 = vand.u32 2147483647, %v336
        %v760 = vand.u32 2147483647, %v337
        %v761 = vand.u32 2147483647, %v338
        %v762 = vand.u32 2147483647, %v339
        %v763 = vand.u32 2147483647, %v340
        %v764 = vand.u32 2147483647, %v341
        %v765 = vand.u32 2147483647, %v342
        %v766 = vand.u32 2147483647, %v343
        %v767 = vand.u32 2147483647, %v344
        %vm768 = vcmp.gt.f32.partialorder %v752, 0.0
        %vm769 = vcmp.gt.f32.partialorder %v753, 0.0
        %vm770 = vcmp.gt.f32.partialorder %v754, 0.0
        %vm771 = vcmp.gt.f32.partialorder %v755, 0.0
        %vm772 = vcmp.gt.f32.partialorder %v756, 0.0
        %vm773 = vcmp.gt.f32.partialorder %v757, 0.0
        %vm774 = vcmp.gt.f32.partialorder %v758, 0.0
        %vm775 = vcmp.gt.f32.partialorder %v759, 0.0
        %vm776 = vcmp.gt.f32.partialorder %v760, 0.0
        %vm777 = vcmp.gt.f32.partialorder %v761, 0.0
        %vm778 = vcmp.gt.f32.partialorder %v762, 0.0
        %vm779 = vcmp.gt.f32.partialorder %v763, 0.0
        %vm780 = vcmp.gt.f32.partialorder %v764, 0.0
        %vm781 = vcmp.gt.f32.partialorder %v765, 0.0
        %vm782 = vcmp.gt.f32.partialorder %v766, 0.0
        %vm783 = vcmp.gt.f32.partialorder %v767, 0.0
        %v784 = vsel %vm768, %v752, 0.0
        %v785 = vsel %vm769, %v753, 0.0
        %v786 = vsel %vm770, %v754, 0.0
        %v787 = vsel %vm771, %v755, 0.0
        %v788 = vsel %vm772, %v756, 0.0
        %v789 = vsel %vm773, %v757, 0.0
        %v790 = vsel %vm774, %v758, 0.0
        %v791 = vsel %vm775, %v759, 0.0
        %v792 = vsel %vm776, %v760, 0.0
        %v793 = vsel %vm777, %v761, 0.0
        %v794 = vsel %vm778, %v762, 0.0
        %v795 = vsel %vm779, %v763, 0.0
        %v796 = vsel %vm780, %v764, 0.0
        %v797 = vsel %vm781, %v765, 0.0
        %v798 = vsel %vm782, %v766, 0.0
        %v799 = vsel %vm783, %v767, 0.0
        %v800 = vmul.f32 %v704, %v557
        %v801 = vmul.f32 %v705, %v562
        %v802 = vmul.f32 %v706, %v567
        %v803 = vmul.f32 %v707, %v572
        %v804 = vmul.f32 %v708, %v577
        %v805 = vmul.f32 %v709, %v582
        %v806 = vmul.f32 %v710, %v587
        %v807 = vmul.f32 %v711, %v592
        %v808 = vmul.f32 %v712, %v597
        %v809 = vmul.f32 %v713, %v602
        %v810 = vmul.f32 %v714, %v607
        %v811 = vmul.f32 %v715, %v612
        %v812 = vmul.f32 %v716, %v617
        %v813 = vmul.f32 %v717, %v622
        %v814 = vmul.f32 %v718, %v627
        %v815 = vmul.f32 %v719, %v632
        %v816 = vmul.f32 %v784, %v557
        %v817 = vmul.f32 %v785, %v562
        %v818 = vmul.f32 %v786, %v567
        %v819 = vmul.f32 %v787, %v572
        %v820 = vmul.f32 %v788, %v577
        %v821 = vmul.f32 %v789, %v582
        %v822 = vmul.f32 %v790, %v587
        %v823 = vmul.f32 %v791, %v592
        %v824 = vmul.f32 %v792, %v597
        %v825 = vmul.f32 %v793, %v602
        %v826 = vmul.f32 %v794, %v607
        %v827 = vmul.f32 %v795, %v612
        %v828 = vmul.f32 %v796, %v617
        %v829 = vmul.f32 %v797, %v622
        %v830 = vmul.f32 %v798, %v627
        %v831 = vmul.f32 %v799, %v632
        %v832 = vld [vmem:[#allocation4] sm:$0xff]
        %v833 = vld [vmem:[#allocation4 + $0x8] sm:$0xff]
        %v834 = vld [vmem:[#allocation4 + $0x10] sm:$0xff]
        %v835 = vld [vmem:[#allocation4 + $0x18] sm:$0xff]
        %v836 = vld [vmem:[#allocation4 + $0x20] sm:$0xff]
        %v837 = vld [vmem:[#allocation4 + $0x28] sm:$0xff]
        %v838 = vld [vmem:[#allocation4 + $0x30] sm:$0xff]
        %v839 = vld [vmem:[#allocation4 + $0x38] sm:$0xff]
        %v840 = vld [vmem:[#allocation4 + $0x40] sm:$0xff]
        %v841 = vld [vmem:[#allocation4 + $0x48] sm:$0xff]
        %v842 = vld [vmem:[#allocation4 + $0x50] sm:$0xff]
        %v843 = vld [vmem:[#allocation4 + $0x58] sm:$0xff]
        %v844 = vld [vmem:[#allocation4 + $0x60] sm:$0xff]
        %v845 = vld [vmem:[#allocation4 + $0x68] sm:$0xff]
        %v846 = vld [vmem:[#allocation4 + $0x70] sm:$0xff]
        %v847 = vld [vmem:[#allocation4 + $0x78] sm:$0xff]
        %848 = vadd.xlane.f32.xlu0 %v800
        %v849 = vpop.xlane.xlu0 %848
        %850 = vadd.xlane.f32.xlu0 %v801
        %v851 = vpop.xlane.xlu0 %850
        %852 = vadd.xlane.f32.xlu0 %v802
        %v853 = vpop.xlane.xlu0 %852
        %854 = vadd.xlane.f32.xlu0 %v803
        %v855 = vpop.xlane.xlu0 %854
        %856 = vadd.xlane.f32.xlu0 %v804
        %v857 = vpop.xlane.xlu0 %856
        %858 = vadd.xlane.f32.xlu0 %v805
        %v859 = vpop.xlane.xlu0 %858
        %860 = vadd.xlane.f32.xlu0 %v806
        %v861 = vpop.xlane.xlu0 %860
        %862 = vadd.xlane.f32.xlu0 %v807
        %v863 = vpop.xlane.xlu0 %862
        %864 = vadd.xlane.f32.xlu0 %v808
        %v865 = vpop.xlane.xlu0 %864
        %866 = vadd.xlane.f32.xlu0 %v809
        %v867 = vpop.xlane.xlu0 %866
        %868 = vadd.xlane.f32.xlu0 %v810
        %v869 = vpop.xlane.xlu0 %868
        %870 = vadd.xlane.f32.xlu0 %v811
        %v871 = vpop.xlane.xlu0 %870
        %872 = vadd.xlane.f32.xlu0 %v812
        %v873 = vpop.xlane.xlu0 %872
        %874 = vadd.xlane.f32.xlu0 %v813
        %v875 = vpop.xlane.xlu0 %874
        %876 = vadd.xlane.f32.xlu0 %v814
        %v877 = vpop.xlane.xlu0 %876
        %878 = vadd.xlane.f32.xlu0 %v815
        %v879 = vpop.xlane.xlu0 %878
        %v880 = vadd.f32 %v832, %v849
        %v881 = vadd.f32 %v833, %v851
        %v882 = vadd.f32 %v834, %v853
        %v883 = vadd.f32 %v835, %v855
        %v884 = vadd.f32 %v836, %v857
        %v885 = vadd.f32 %v837, %v859
        %v886 = vadd.f32 %v838, %v861
        %v887 = vadd.f32 %v839, %v863
        %v888 = vadd.f32 %v840, %v865
        %v889 = vadd.f32 %v841, %v867
        %v890 = vadd.f32 %v842, %v869
        %v891 = vadd.f32 %v843, %v871
        %v892 = vadd.f32 %v844, %v873
        %v893 = vadd.f32 %v845, %v875
        %v894 = vadd.f32 %v846, %v877
        %v895 = vadd.f32 %v847, %v879
        %vm896 = vcmask 7168
        %897 = vst.msk [vmem:[#allocation4] sm:$0xff] %vm896, %v880
        %898 = vst.msk [vmem:[#allocation4 + $0x8] sm:$0xff] %vm896, %v881
        %899 = vst.msk [vmem:[#allocation4 + $0x10] sm:$0xff] %vm896, %v882
        %900 = vst.msk [vmem:[#allocation4 + $0x18] sm:$0xff] %vm896, %v883
        %901 = vst.msk [vmem:[#allocation4 + $0x20] sm:$0xff] %vm896, %v884
        %902 = vst.msk [vmem:[#allocation4 + $0x28] sm:$0xff] %vm896, %v885
        %903 = vst.msk [vmem:[#allocation4 + $0x30] sm:$0xff] %vm896, %v886
        %904 = vst.msk [vmem:[#allocation4 + $0x38] sm:$0xff] %vm896, %v887
        %905 = vst.msk [vmem:[#allocation4 + $0x40] sm:$0xff] %vm896, %v888
        %906 = vst.msk [vmem:[#allocation4 + $0x48] sm:$0xff] %vm896, %v889
        %907 = vst.msk [vmem:[#allocation4 + $0x50] sm:$0xff] %vm896, %v890
        %908 = vst.msk [vmem:[#allocation4 + $0x58] sm:$0xff] %vm896, %v891
        %909 = vst.msk [vmem:[#allocation4 + $0x60] sm:$0xff] %vm896, %v892
        %910 = vst.msk [vmem:[#allocation4 + $0x68] sm:$0xff] %vm896, %v893
        %911 = vst.msk [vmem:[#allocation4 + $0x70] sm:$0xff] %vm896, %v894
        %912 = vst.msk [vmem:[#allocation4 + $0x78] sm:$0xff] %vm896, %v895
        %v913 = vld [vmem:[#allocation5] sm:$0xff]
        %v914 = vld [vmem:[#allocation5 + $0x8] sm:$0xff]
        %v915 = vld [vmem:[#allocation5 + $0x10] sm:$0xff]
        %v916 = vld [vmem:[#allocation5 + $0x18] sm:$0xff]
        %v917 = vld [vmem:[#allocation5 + $0x20] sm:$0xff]
        %v918 = vld [vmem:[#allocation5 + $0x28] sm:$0xff]
        %v919 = vld [vmem:[#allocation5 + $0x30] sm:$0xff]
        %v920 = vld [vmem:[#allocation5 + $0x38] sm:$0xff]
        %v921 = vld [vmem:[#allocation5 + $0x40] sm:$0xff]
        %v922 = vld [vmem:[#allocation5 + $0x48] sm:$0xff]
        %v923 = vld [vmem:[#allocation5 + $0x50] sm:$0xff]
        %v924 = vld [vmem:[#allocation5 + $0x58] sm:$0xff]
        %v925 = vld [vmem:[#allocation5 + $0x60] sm:$0xff]
        %v926 = vld [vmem:[#allocation5 + $0x68] sm:$0xff]
        %v927 = vld [vmem:[#allocation5 + $0x70] sm:$0xff]
        %v928 = vld [vmem:[#allocation5 + $0x78] sm:$0xff]
        %929 = vadd.xlane.f32.xlu0 %v736
        %v930 = vpop.xlane.xlu0 %929
        %931 = vadd.xlane.f32.xlu0 %v737
        %v932 = vpop.xlane.xlu0 %931
        %933 = vadd.xlane.f32.xlu0 %v738
        %v934 = vpop.xlane.xlu0 %933
        %935 = vadd.xlane.f32.xlu0 %v739
        %v936 = vpop.xlane.xlu0 %935
        %937 = vadd.xlane.f32.xlu0 %v740
        %v938 = vpop.xlane.xlu0 %937
        %939 = vadd.xlane.f32.xlu0 %v741
        %v940 = vpop.xlane.xlu0 %939
        %941 = vadd.xlane.f32.xlu0 %v742
        %v942 = vpop.xlane.xlu0 %941
        %943 = vadd.xlane.f32.xlu0 %v743
        %v944 = vpop.xlane.xlu0 %943
        %945 = vadd.xlane.f32.xlu0 %v744
        %v946 = vpop.xlane.xlu0 %945
        %947 = vadd.xlane.f32.xlu0 %v745
        %v948 = vpop.xlane.xlu0 %947
        %949 = vadd.xlane.f32.xlu0 %v746
        %v950 = vpop.xlane.xlu0 %949
        %951 = vadd.xlane.f32.xlu0 %v747
        %v952 = vpop.xlane.xlu0 %951
        %953 = vadd.xlane.f32.xlu0 %v748
        %v954 = vpop.xlane.xlu0 %953
        %955 = vadd.xlane.f32.xlu0 %v749
        %v956 = vpop.xlane.xlu0 %955
        %957 = vadd.xlane.f32.xlu0 %v750
        %v958 = vpop.xlane.xlu0 %957
        %959 = vadd.xlane.f32.xlu0 %v751
        %v960 = vpop.xlane.xlu0 %959
        %v961 = vadd.f32 %v913, %v930
        %v962 = vadd.f32 %v914, %v932
        %v963 = vadd.f32 %v915, %v934
        %v964 = vadd.f32 %v916, %v936
        %v965 = vadd.f32 %v917, %v938
        %v966 = vadd.f32 %v918, %v940
        %v967 = vadd.f32 %v919, %v942
        %v968 = vadd.f32 %v920, %v944
        %v969 = vadd.f32 %v921, %v946
        %v970 = vadd.f32 %v922, %v948
        %v971 = vadd.f32 %v923, %v950
        %v972 = vadd.f32 %v924, %v952
        %v973 = vadd.f32 %v925, %v954
        %v974 = vadd.f32 %v926, %v956
        %v975 = vadd.f32 %v927, %v958
        %v976 = vadd.f32 %v928, %v960
        %977 = vst.msk [vmem:[#allocation5] sm:$0xff] %vm896, %v961
        %978 = vst.msk [vmem:[#allocation5 + $0x8] sm:$0xff] %vm896, %v962
        %979 = vst.msk [vmem:[#allocation5 + $0x10] sm:$0xff] %vm896, %v963
        %980 = vst.msk [vmem:[#allocation5 + $0x18] sm:$0xff] %vm896, %v964
        %981 = vst.msk [vmem:[#allocation5 + $0x20] sm:$0xff] %vm896, %v965
        %982 = vst.msk [vmem:[#allocation5 + $0x28] sm:$0xff] %vm896, %v966
        %983 = vst.msk [vmem:[#allocation5 + $0x30] sm:$0xff] %vm896, %v967
        %984 = vst.msk [vmem:[#allocation5 + $0x38] sm:$0xff] %vm896, %v968
        %985 = vst.msk [vmem:[#allocation5 + $0x40] sm:$0xff] %vm896, %v969
        %986 = vst.msk [vmem:[#allocation5 + $0x48] sm:$0xff] %vm896, %v970
        %987 = vst.msk [vmem:[#allocation5 + $0x50] sm:$0xff] %vm896, %v971
        %988 = vst.msk [vmem:[#allocation5 + $0x58] sm:$0xff] %vm896, %v972
        %989 = vst.msk [vmem:[#allocation5 + $0x60] sm:$0xff] %vm896, %v973
        %990 = vst.msk [vmem:[#allocation5 + $0x68] sm:$0xff] %vm896, %v974
        %991 = vst.msk [vmem:[#allocation5 + $0x70] sm:$0xff] %vm896, %v975
        %992 = vst.msk [vmem:[#allocation5 + $0x78] sm:$0xff] %vm896, %v976
        %v993 = vld [vmem:[#allocation2] sm:$0xff]
        %v994 = vld [vmem:[#allocation2 + $0x8] sm:$0xff]
        %v995 = vld [vmem:[#allocation2 + $0x10] sm:$0xff]
        %v996 = vld [vmem:[#allocation2 + $0x18] sm:$0xff]
        %v997 = vld [vmem:[#allocation2 + $0x20] sm:$0xff]
        %v998 = vld [vmem:[#allocation2 + $0x28] sm:$0xff]
        %v999 = vld [vmem:[#allocation2 + $0x30] sm:$0xff]
        %v1000 = vld [vmem:[#allocation2 + $0x38] sm:$0xff]
        %v1001 = vld [vmem:[#allocation2 + $0x40] sm:$0xff]
        %v1002 = vld [vmem:[#allocation2 + $0x48] sm:$0xff]
        %v1003 = vld [vmem:[#allocation2 + $0x50] sm:$0xff]
        %v1004 = vld [vmem:[#allocation2 + $0x58] sm:$0xff]
        %v1005 = vld [vmem:[#allocation2 + $0x60] sm:$0xff]
        %v1006 = vld [vmem:[#allocation2 + $0x68] sm:$0xff]
        %v1007 = vld [vmem:[#allocation2 + $0x70] sm:$0xff]
        %v1008 = vld [vmem:[#allocation2 + $0x78] sm:$0xff]
        %1009 = vmax.xlane.f32.xlu0 %v816
        %v1010 = vpop.xlane.xlu0 %1009
        %1011 = vmax.xlane.f32.xlu0 %v817
        %v1012 = vpop.xlane.xlu0 %1011
        %1013 = vmax.xlane.f32.xlu0 %v818
        %v1014 = vpop.xlane.xlu0 %1013
        %1015 = vmax.xlane.f32.xlu0 %v819
        %v1016 = vpop.xlane.xlu0 %1015
        %1017 = vmax.xlane.f32.xlu0 %v820
        %v1018 = vpop.xlane.xlu0 %1017
        %1019 = vmax.xlane.f32.xlu0 %v821
        %v1020 = vpop.xlane.xlu0 %1019
        %1021 = vmax.xlane.f32.xlu0 %v822
        %v1022 = vpop.xlane.xlu0 %1021
        %1023 = vmax.xlane.f32.xlu0 %v823
        %v1024 = vpop.xlane.xlu0 %1023
        %1025 = vmax.xlane.f32.xlu0 %v824
        %v1026 = vpop.xlane.xlu0 %1025
        %1027 = vmax.xlane.f32.xlu0 %v825
        %v1028 = vpop.xlane.xlu0 %1027
        %1029 = vmax.xlane.f32.xlu0 %v826
        %v1030 = vpop.xlane.xlu0 %1029
        %1031 = vmax.xlane.f32.xlu0 %v827
        %v1032 = vpop.xlane.xlu0 %1031
        %1033 = vmax.xlane.f32.xlu0 %v828
        %v1034 = vpop.xlane.xlu0 %1033
        %1035 = vmax.xlane.f32.xlu0 %v829
        %v1036 = vpop.xlane.xlu0 %1035
        %1037 = vmax.xlane.f32.xlu0 %v830
        %v1038 = vpop.xlane.xlu0 %1037
        %1039 = vmax.xlane.f32.xlu0 %v831
        %v1040 = vpop.xlane.xlu0 %1039
        %v1041 = vmax.f32 %v993, %v1010
        %v1042 = vmax.f32 %v994, %v1012
        %v1043 = vmax.f32 %v995, %v1014
        %v1044 = vmax.f32 %v996, %v1016
        %v1045 = vmax.f32 %v997, %v1018
        %v1046 = vmax.f32 %v998, %v1020
        %v1047 = vmax.f32 %v999, %v1022
        %v1048 = vmax.f32 %v1000, %v1024
        %v1049 = vmax.f32 %v1001, %v1026
        %v1050 = vmax.f32 %v1002, %v1028
        %v1051 = vmax.f32 %v1003, %v1030
        %v1052 = vmax.f32 %v1004, %v1032
        %v1053 = vmax.f32 %v1005, %v1034
        %v1054 = vmax.f32 %v1006, %v1036
        %v1055 = vmax.f32 %v1007, %v1038
        %v1056 = vmax.f32 %v1008, %v1040
        %v1057 = vsub.f32 %v993, %v1041
        %v1058 = vsub.f32 %v994, %v1042
        %v1059 = vsub.f32 %v995, %v1043
        %v1060 = vsub.f32 %v996, %v1044
        %v1061 = vsub.f32 %v997, %v1045
        %v1062 = vsub.f32 %v998, %v1046
        %v1063 = vsub.f32 %v999, %v1047
        %v1064 = vsub.f32 %v1000, %v1048
        %v1065 = vsub.f32 %v1001, %v1049
        %v1066 = vsub.f32 %v1002, %v1050
        %v1067 = vsub.f32 %v1003, %v1051
        %v1068 = vsub.f32 %v1004, %v1052
        %v1069 = vsub.f32 %v1005, %v1053
        %v1070 = vsub.f32 %v1006, %v1054
        %v1071 = vsub.f32 %v1007, %v1055
        %v1072 = vsub.f32 %v1008, %v1056
        %v1073 = vmul.f32 %v1057, 1.442695
        %v1074 = vpow.pop %v1073
        %v1075 = vmul.f32 %v1058, 1.442695
        %v1076 = vpow.pop %v1075
        %v1077 = vmul.f32 %v1059, 1.442695
        %v1078 = vpow.pop %v1077
        %v1079 = vmul.f32 %v1060, 1.442695
        %v1080 = vpow.pop %v1079
        %v1081 = vmul.f32 %v1061, 1.442695
        %v1082 = vpow.pop %v1081
        %v1083 = vmul.f32 %v1062, 1.442695
        %v1084 = vpow.pop %v1083
        %v1085 = vmul.f32 %v1063, 1.442695
        %v1086 = vpow.pop %v1085
        %v1087 = vmul.f32 %v1064, 1.442695
        %v1088 = vpow.pop %v1087
        %v1089 = vmul.f32 %v1065, 1.442695
        %v1090 = vpow.pop %v1089
        %v1091 = vmul.f32 %v1066, 1.442695
        %v1092 = vpow.pop %v1091
        %v1093 = vmul.f32 %v1067, 1.442695
        %v1094 = vpow.pop %v1093
        %v1095 = vmul.f32 %v1068, 1.442695
        %v1096 = vpow.pop %v1095
        %v1097 = vmul.f32 %v1069, 1.442695
        %v1098 = vpow.pop %v1097
        %v1099 = vmul.f32 %v1070, 1.442695
        %v1100 = vpow.pop %v1099
        %v1101 = vmul.f32 %v1071, 1.442695
        %v1102 = vpow.pop %v1101
        %v1103 = vmul.f32 %v1072, 1.442695
        %v1104 = vpow.pop %v1103
        %1106 = vset.pattern.permute.xlu0 0
        %1107 = vperm.xlu0 %1106, %v1041
        %v1108 = vpop.permute.xlu0 %1107
        %1111 = vset.pattern.permute.xlu0 0
        %1112 = vperm.xlu0 %1111, %v1042
        %v1113 = vpop.permute.xlu0 %1112
        %1116 = vset.pattern.permute.xlu0 0
        %1117 = vperm.xlu0 %1116, %v1043
        %v1118 = vpop.permute.xlu0 %1117
        %1121 = vset.pattern.permute.xlu0 0
        %1122 = vperm.xlu0 %1121, %v1044
        %v1123 = vpop.permute.xlu0 %1122
        %1126 = vset.pattern.permute.xlu0 0
        %1127 = vperm.xlu0 %1126, %v1045
        %v1128 = vpop.permute.xlu0 %1127
        %1131 = vset.pattern.permute.xlu0 0
        %1132 = vperm.xlu0 %1131, %v1046
        %v1133 = vpop.permute.xlu0 %1132
        %1136 = vset.pattern.permute.xlu0 0
        %1137 = vperm.xlu0 %1136, %v1047
        %v1138 = vpop.permute.xlu0 %1137
        %1141 = vset.pattern.permute.xlu0 0
        %1142 = vperm.xlu0 %1141, %v1048
        %v1143 = vpop.permute.xlu0 %1142
        %1146 = vset.pattern.permute.xlu0 0
        %1147 = vperm.xlu0 %1146, %v1049
        %v1148 = vpop.permute.xlu0 %1147
        %1151 = vset.pattern.permute.xlu0 0
        %1152 = vperm.xlu0 %1151, %v1050
        %v1153 = vpop.permute.xlu0 %1152
        %1156 = vset.pattern.permute.xlu0 0
        %1157 = vperm.xlu0 %1156, %v1051
        %v1158 = vpop.permute.xlu0 %1157
        %1161 = vset.pattern.permute.xlu0 0
        %1162 = vperm.xlu0 %1161, %v1052
        %v1163 = vpop.permute.xlu0 %1162
        %1166 = vset.pattern.permute.xlu0 0
        %1167 = vperm.xlu0 %1166, %v1053
        %v1168 = vpop.permute.xlu0 %1167
        %1171 = vset.pattern.permute.xlu0 0
        %1172 = vperm.xlu0 %1171, %v1054
        %v1173 = vpop.permute.xlu0 %1172
        %1176 = vset.pattern.permute.xlu0 0
        %1177 = vperm.xlu0 %1176, %v1055
        %v1178 = vpop.permute.xlu0 %1177
        %1181 = vset.pattern.permute.xlu0 0
        %1182 = vperm.xlu0 %1181, %v1056
        %v1183 = vpop.permute.xlu0 %1182
        %v1185 = vsub.f32 %v816, %v1108
        %v1186 = vsub.f32 %v817, %v1113
        %v1187 = vsub.f32 %v818, %v1118
        %v1188 = vsub.f32 %v819, %v1123
        %v1189 = vsub.f32 %v820, %v1128
        %v1190 = vsub.f32 %v821, %v1133
        %v1191 = vsub.f32 %v822, %v1138
        %v1192 = vsub.f32 %v823, %v1143
        %v1193 = vsub.f32 %v824, %v1148
        %v1194 = vsub.f32 %v825, %v1153
        %v1195 = vsub.f32 %v826, %v1158
        %v1196 = vsub.f32 %v827, %v1163
        %v1197 = vsub.f32 %v828, %v1168
        %v1198 = vsub.f32 %v829, %v1173
        %v1199 = vsub.f32 %v830, %v1178
        %v1200 = vsub.f32 %v831, %v1183
        %v1201 = vmul.f32 %v1185, 1.442695
        %v1202 = vpow.pop %v1201
        %v1203 = vmul.f32 %v1186, 1.442695
        %v1204 = vpow.pop %v1203
        %v1205 = vmul.f32 %v1187, 1.442695
        %v1206 = vpow.pop %v1205
        %v1207 = vmul.f32 %v1188, 1.442695
        %v1208 = vpow.pop %v1207
        %v1209 = vmul.f32 %v1189, 1.442695
        %v1210 = vpow.pop %v1209
        %v1211 = vmul.f32 %v1190, 1.442695
        %v1212 = vpow.pop %v1211
        %v1213 = vmul.f32 %v1191, 1.442695
        %v1214 = vpow.pop %v1213
        %v1215 = vmul.f32 %v1192, 1.442695
        %v1216 = vpow.pop %v1215
        %v1217 = vmul.f32 %v1193, 1.442695
        %v1218 = vpow.pop %v1217
        %v1219 = vmul.f32 %v1194, 1.442695
        %v1220 = vpow.pop %v1219
        %v1221 = vmul.f32 %v1195, 1.442695
        %v1222 = vpow.pop %v1221
        %v1223 = vmul.f32 %v1196, 1.442695
        %v1224 = vpow.pop %v1223
        %v1225 = vmul.f32 %v1197, 1.442695
        %v1226 = vpow.pop %v1225
        %v1227 = vmul.f32 %v1198, 1.442695
        %v1228 = vpow.pop %v1227
        %v1229 = vmul.f32 %v1199, 1.442695
        %v1230 = vpow.pop %v1229
        %v1231 = vmul.f32 %v1200, 1.442695
        %v1232 = vpow.pop %v1231
        %1233 = vadd.xlane.f32.xlu0 %v1202
        %v1234 = vpop.xlane.xlu0 %1233
        %1235 = vadd.xlane.f32.xlu0 %v1204
        %v1236 = vpop.xlane.xlu0 %1235
        %1237 = vadd.xlane.f32.xlu0 %v1206
        %v1238 = vpop.xlane.xlu0 %1237
        %1239 = vadd.xlane.f32.xlu0 %v1208
        %v1240 = vpop.xlane.xlu0 %1239
        %1241 = vadd.xlane.f32.xlu0 %v1210
        %v1242 = vpop.xlane.xlu0 %1241
        %1243 = vadd.xlane.f32.xlu0 %v1212
        %v1244 = vpop.xlane.xlu0 %1243
        %1245 = vadd.xlane.f32.xlu0 %v1214
        %v1246 = vpop.xlane.xlu0 %1245
        %1247 = vadd.xlane.f32.xlu0 %v1216
        %v1248 = vpop.xlane.xlu0 %1247
        %1249 = vadd.xlane.f32.xlu0 %v1218
        %v1250 = vpop.xlane.xlu0 %1249
        %1251 = vadd.xlane.f32.xlu0 %v1220
        %v1252 = vpop.xlane.xlu0 %1251
        %1253 = vadd.xlane.f32.xlu0 %v1222
        %v1254 = vpop.xlane.xlu0 %1253
        %1255 = vadd.xlane.f32.xlu0 %v1224
        %v1256 = vpop.xlane.xlu0 %1255
        %1257 = vadd.xlane.f32.xlu0 %v1226
        %v1258 = vpop.xlane.xlu0 %1257
        %1259 = vadd.xlane.f32.xlu0 %v1228
        %v1260 = vpop.xlane.xlu0 %1259
        %1261 = vadd.xlane.f32.xlu0 %v1230
        %v1262 = vpop.xlane.xlu0 %1261
        %1263 = vadd.xlane.f32.xlu0 %v1232
        %v1264 = vpop.xlane.xlu0 %1263
        %1265 = vst.msk [vmem:[#allocation2] sm:$0xff] %vm896, %v1041
        %1266 = vst.msk [vmem:[#allocation2 + $0x8] sm:$0xff] %vm896, %v1042
        %1267 = vst.msk [vmem:[#allocation2 + $0x10] sm:$0xff] %vm896, %v1043
        %1268 = vst.msk [vmem:[#allocation2 + $0x18] sm:$0xff] %vm896, %v1044
        %1269 = vst.msk [vmem:[#allocation2 + $0x20] sm:$0xff] %vm896, %v1045
        %1270 = vst.msk [vmem:[#allocation2 + $0x28] sm:$0xff] %vm896, %v1046
        %1271 = vst.msk [vmem:[#allocation2 + $0x30] sm:$0xff] %vm896, %v1047
        %1272 = vst.msk [vmem:[#allocation2 + $0x38] sm:$0xff] %vm896, %v1048
        %1273 = vst.msk [vmem:[#allocation2 + $0x40] sm:$0xff] %vm896, %v1049
        %1274 = vst.msk [vmem:[#allocation2 + $0x48] sm:$0xff] %vm896, %v1050
        %1275 = vst.msk [vmem:[#allocation2 + $0x50] sm:$0xff] %vm896, %v1051
        %1276 = vst.msk [vmem:[#allocation2 + $0x58] sm:$0xff] %vm896, %v1052
        %1277 = vst.msk [vmem:[#allocation2 + $0x60] sm:$0xff] %vm896, %v1053
        %1278 = vst.msk [vmem:[#allocation2 + $0x68] sm:$0xff] %vm896, %v1054
        %1279 = vst.msk [vmem:[#allocation2 + $0x70] sm:$0xff] %vm896, %v1055
        %1280 = vst.msk [vmem:[#allocation2 + $0x78] sm:$0xff] %vm896, %v1056
        %p1281 = scmp.ne.s32.totalorder %s18, %s19
        // Predicated region
        $region75: #{tpu_custom_call.1} parent=65 // pred_check
          %p1282 = pneg %p1281
        $region76: #{tpu_custom_call.1} parent=65 // pred_check_branch
          %1284 = sbr.rel (%p1282) target = $region78
        $region77: #{tpu_custom_call.1} parent=65 // pred_region
          %v1285 = vld [vmem:[#allocation3] sm:$0xff]
          %v1286 = vld [vmem:[#allocation3 + $0x8] sm:$0xff]
          %v1287 = vld [vmem:[#allocation3 + $0x10] sm:$0xff]
          %v1288 = vld [vmem:[#allocation3 + $0x18] sm:$0xff]
          %v1289 = vld [vmem:[#allocation3 + $0x20] sm:$0xff]
          %v1290 = vld [vmem:[#allocation3 + $0x28] sm:$0xff]
          %v1291 = vld [vmem:[#allocation3 + $0x30] sm:$0xff]
          %v1292 = vld [vmem:[#allocation3 + $0x38] sm:$0xff]
          %v1293 = vld [vmem:[#allocation3 + $0x40] sm:$0xff]
          %v1294 = vld [vmem:[#allocation3 + $0x48] sm:$0xff]
          %v1295 = vld [vmem:[#allocation3 + $0x50] sm:$0xff]
          %v1296 = vld [vmem:[#allocation3 + $0x58] sm:$0xff]
          %v1297 = vld [vmem:[#allocation3 + $0x60] sm:$0xff]
          %v1298 = vld [vmem:[#allocation3 + $0x68] sm:$0xff]
          %v1299 = vld [vmem:[#allocation3 + $0x70] sm:$0xff]
          %v1300 = vld [vmem:[#allocation3 + $0x78] sm:$0xff]
          %v1301 = vmul.f32 %v1074, %v1285
          %v1302 = vmul.f32 %v1076, %v1286
          %v1303 = vmul.f32 %v1078, %v1287
          %v1304 = vmul.f32 %v1080, %v1288
          %v1305 = vmul.f32 %v1082, %v1289
          %v1306 = vmul.f32 %v1084, %v1290
          %v1307 = vmul.f32 %v1086, %v1291
          %v1308 = vmul.f32 %v1088, %v1292
          %v1309 = vmul.f32 %v1090, %v1293
          %v1310 = vmul.f32 %v1092, %v1294
          %v1311 = vmul.f32 %v1094, %v1295
          %v1312 = vmul.f32 %v1096, %v1296
          %v1313 = vmul.f32 %v1098, %v1297
          %v1314 = vmul.f32 %v1100, %v1298
          %v1315 = vmul.f32 %v1102, %v1299
          %v1316 = vmul.f32 %v1104, %v1300
          %v1317 = vadd.f32 %v1301, %v1234
          %v1318 = vadd.f32 %v1302, %v1236
          %v1319 = vadd.f32 %v1303, %v1238
          %v1320 = vadd.f32 %v1304, %v1240
          %v1321 = vadd.f32 %v1305, %v1242
          %v1322 = vadd.f32 %v1306, %v1244
          %v1323 = vadd.f32 %v1307, %v1246
          %v1324 = vadd.f32 %v1308, %v1248
          %v1325 = vadd.f32 %v1309, %v1250
          %v1326 = vadd.f32 %v1310, %v1252
          %v1327 = vadd.f32 %v1311, %v1254
          %v1328 = vadd.f32 %v1312, %v1256
          %v1329 = vadd.f32 %v1313, %v1258
          %v1330 = vadd.f32 %v1314, %v1260
          %v1331 = vadd.f32 %v1315, %v1262
          %v1332 = vadd.f32 %v1316, %v1264
          %1333 = vst.msk [vmem:[#allocation3] sm:$0xff] %vm896, %v1317
          %1334 = vst.msk [vmem:[#allocation3 + $0x8] sm:$0xff] %vm896, %v1318
          %1335 = vst.msk [vmem:[#allocation3 + $0x10] sm:$0xff] %vm896, %v1319
          %1336 = vst.msk [vmem:[#allocation3 + $0x18] sm:$0xff] %vm896, %v1320
          %1337 = vst.msk [vmem:[#allocation3 + $0x20] sm:$0xff] %vm896, %v1321
          %1338 = vst.msk [vmem:[#allocation3 + $0x28] sm:$0xff] %vm896, %v1322
          %1339 = vst.msk [vmem:[#allocation3 + $0x30] sm:$0xff] %vm896, %v1323
          %1340 = vst.msk [vmem:[#allocation3 + $0x38] sm:$0xff] %vm896, %v1324
          %1341 = vst.msk [vmem:[#allocation3 + $0x40] sm:$0xff] %vm896, %v1325
          %1342 = vst.msk [vmem:[#allocation3 + $0x48] sm:$0xff] %vm896, %v1326
          %1343 = vst.msk [vmem:[#allocation3 + $0x50] sm:$0xff] %vm896, %v1327
          %1344 = vst.msk [vmem:[#allocation3 + $0x58] sm:$0xff] %vm896, %v1328
          %1345 = vst.msk [vmem:[#allocation3 + $0x60] sm:$0xff] %vm896, %v1329
          %1346 = vst.msk [vmem:[#allocation3 + $0x68] sm:$0xff] %vm896, %v1330
          %1347 = vst.msk [vmem:[#allocation3 + $0x70] sm:$0xff] %vm896, %v1331
          %1348 = vst.msk [vmem:[#allocation3 + $0x78] sm:$0xff] %vm896, %v1332
        $region78: #{tpu_custom_call.1} parent=65 // pred_fallthru
          _
        %p1349 = scmp.eq.s32.totalorder %s18, %s19
        // Predicated region
        $region79: #{tpu_custom_call.1} parent=65 // pred_check
          %p1350 = pneg %p1349
        $region80: #{tpu_custom_call.1} parent=65 // pred_check_branch
          %1352 = sbr.rel (%p1350) target = $region82
        $region81: #{tpu_custom_call.1} parent=65 // pred_region
          %v1353 = vlaneseq
          %v1354 = vshrl.u32 %v1353, 7
          %v1355 = vadd.s32 %v1354, 8
          %v1356 = vadd.s32 %v1354, 16
          %v1357 = vadd.s32 %v1354, 24
          %v1358 = vadd.s32 %v1354, 32
          %v1359 = vadd.s32 %v1354, 40
          %v1360 = vadd.s32 %v1354, 48
          %v1361 = vadd.s32 %v1354, 56
          %v1362 = vadd.s32 %v1354, 64
          %v1363 = vadd.s32 %v1354, 72
          %v1364 = vadd.s32 %v1354, 80
          %v1365 = vadd.s32 %v1354, 88
          %v1366 = vadd.s32 %v1354, 96
          %v1367 = vadd.s32 %v1354, 104
          %v1368 = vadd.s32 %v1354, 112
          %v1369 = vadd.s32 %v1354, 120
          %v1370 = vlaneseq
          %v1371 = vand.u32 %v1370, 127
          %vm1372 = vcmp.eq.s32.totalorder %v1354, %v1371
          %vm1373 = vcmp.eq.s32.totalorder %v1355, %v1371
          %vm1374 = vcmp.eq.s32.totalorder %v1356, %v1371
          %vm1375 = vcmp.eq.s32.totalorder %v1357, %v1371
          %vm1376 = vcmp.eq.s32.totalorder %v1358, %v1371
          %vm1377 = vcmp.eq.s32.totalorder %v1359, %v1371
          %vm1378 = vcmp.eq.s32.totalorder %v1360, %v1371
          %vm1379 = vcmp.eq.s32.totalorder %v1361, %v1371
          %vm1380 = vcmp.eq.s32.totalorder %v1362, %v1371
          %vm1381 = vcmp.eq.s32.totalorder %v1363, %v1371
          %vm1382 = vcmp.eq.s32.totalorder %v1364, %v1371
          %vm1383 = vcmp.eq.s32.totalorder %v1365, %v1371
          %vm1384 = vcmp.eq.s32.totalorder %v1366, %v1371
          %vm1385 = vcmp.eq.s32.totalorder %v1367, %v1371
          %vm1386 = vcmp.eq.s32.totalorder %v1368, %v1371
          %vm1387 = vcmp.eq.s32.totalorder %v1369, %v1371
          %v1388 = vsel %vm1372, %v1202, 0.0
          %v1389 = vsel %vm1373, %v1204, 0.0
          %v1390 = vsel %vm1374, %v1206, 0.0
          %v1391 = vsel %vm1375, %v1208, 0.0
          %v1392 = vsel %vm1376, %v1210, 0.0
          %v1393 = vsel %vm1377, %v1212, 0.0
          %v1394 = vsel %vm1378, %v1214, 0.0
          %v1395 = vsel %vm1379, %v1216, 0.0
          %v1396 = vsel %vm1380, %v1218, 0.0
          %v1397 = vsel %vm1381, %v1220, 0.0
          %v1398 = vsel %vm1382, %v1222, 0.0
          %v1399 = vsel %vm1383, %v1224, 0.0
          %v1400 = vsel %vm1384, %v1226, 0.0
          %v1401 = vsel %vm1385, %v1228, 0.0
          %v1402 = vsel %vm1386, %v1230, 0.0
          %v1403 = vsel %vm1387, %v1232, 0.0
          %1404 = vadd.xlane.f32.xlu0 %v1388
          %v1405 = vpop.xlane.xlu0 %1404
          %1406 = vadd.xlane.f32.xlu0 %v1389
          %v1407 = vpop.xlane.xlu0 %1406
          %1408 = vadd.xlane.f32.xlu0 %v1390
          %v1409 = vpop.xlane.xlu0 %1408
          %1410 = vadd.xlane.f32.xlu0 %v1391
          %v1411 = vpop.xlane.xlu0 %1410
          %1412 = vadd.xlane.f32.xlu0 %v1392
          %v1413 = vpop.xlane.xlu0 %1412
          %1414 = vadd.xlane.f32.xlu0 %v1393
          %v1415 = vpop.xlane.xlu0 %1414
          %1416 = vadd.xlane.f32.xlu0 %v1394
          %v1417 = vpop.xlane.xlu0 %1416
          %1418 = vadd.xlane.f32.xlu0 %v1395
          %v1419 = vpop.xlane.xlu0 %1418
          %1420 = vadd.xlane.f32.xlu0 %v1396
          %v1421 = vpop.xlane.xlu0 %1420
          %1422 = vadd.xlane.f32.xlu0 %v1397
          %v1423 = vpop.xlane.xlu0 %1422
          %1424 = vadd.xlane.f32.xlu0 %v1398
          %v1425 = vpop.xlane.xlu0 %1424
          %1426 = vadd.xlane.f32.xlu0 %v1399
          %v1427 = vpop.xlane.xlu0 %1426
          %1428 = vadd.xlane.f32.xlu0 %v1400
          %v1429 = vpop.xlane.xlu0 %1428
          %1430 = vadd.xlane.f32.xlu0 %v1401
          %v1431 = vpop.xlane.xlu0 %1430
          %1432 = vadd.xlane.f32.xlu0 %v1402
          %v1433 = vpop.xlane.xlu0 %1432
          %1434 = vadd.xlane.f32.xlu0 %v1403
          %v1435 = vpop.xlane.xlu0 %1434
          %v1436 = vld [vmem:[#allocation3] sm:$0xff]
          %v1437 = vld [vmem:[#allocation3 + $0x8] sm:$0xff]
          %v1438 = vld [vmem:[#allocation3 + $0x10] sm:$0xff]
          %v1439 = vld [vmem:[#allocation3 + $0x18] sm:$0xff]
          %v1440 = vld [vmem:[#allocation3 + $0x20] sm:$0xff]
          %v1441 = vld [vmem:[#allocation3 + $0x28] sm:$0xff]
          %v1442 = vld [vmem:[#allocation3 + $0x30] sm:$0xff]
          %v1443 = vld [vmem:[#allocation3 + $0x38] sm:$0xff]
          %v1444 = vld [vmem:[#allocation3 + $0x40] sm:$0xff]
          %v1445 = vld [vmem:[#allocation3 + $0x48] sm:$0xff]
          %v1446 = vld [vmem:[#allocation3 + $0x50] sm:$0xff]
          %v1447 = vld [vmem:[#allocation3 + $0x58] sm:$0xff]
          %v1448 = vld [vmem:[#allocation3 + $0x60] sm:$0xff]
          %v1449 = vld [vmem:[#allocation3 + $0x68] sm:$0xff]
          %v1450 = vld [vmem:[#allocation3 + $0x70] sm:$0xff]
          %v1451 = vld [vmem:[#allocation3 + $0x78] sm:$0xff]
          %v1452 = vmul.f32 %v1074, %v1436
          %v1453 = vmul.f32 %v1076, %v1437
          %v1454 = vmul.f32 %v1078, %v1438
          %v1455 = vmul.f32 %v1080, %v1439
          %v1456 = vmul.f32 %v1082, %v1440
          %v1457 = vmul.f32 %v1084, %v1441
          %v1458 = vmul.f32 %v1086, %v1442
          %v1459 = vmul.f32 %v1088, %v1443
          %v1460 = vmul.f32 %v1090, %v1444
          %v1461 = vmul.f32 %v1092, %v1445
          %v1462 = vmul.f32 %v1094, %v1446
          %v1463 = vmul.f32 %v1096, %v1447
          %v1464 = vmul.f32 %v1098, %v1448
          %v1465 = vmul.f32 %v1100, %v1449
          %v1466 = vmul.f32 %v1102, %v1450
          %v1467 = vmul.f32 %v1104, %v1451
          %v1468 = vsub.f32 %v1234, %v1405
          %v1469 = vsub.f32 %v1236, %v1407
          %v1470 = vsub.f32 %v1238, %v1409
          %v1471 = vsub.f32 %v1240, %v1411
          %v1472 = vsub.f32 %v1242, %v1413
          %v1473 = vsub.f32 %v1244, %v1415
          %v1474 = vsub.f32 %v1246, %v1417
          %v1475 = vsub.f32 %v1248, %v1419
          %v1476 = vsub.f32 %v1250, %v1421
          %v1477 = vsub.f32 %v1252, %v1423
          %v1478 = vsub.f32 %v1254, %v1425
          %v1479 = vsub.f32 %v1256, %v1427
          %v1480 = vsub.f32 %v1258, %v1429
          %v1481 = vsub.f32 %v1260, %v1431
          %v1482 = vsub.f32 %v1262, %v1433
          %v1483 = vsub.f32 %v1264, %v1435
          %v1484 = vadd.f32 %v1452, %v1468
          %v1485 = vadd.f32 %v1453, %v1469
          %v1486 = vadd.f32 %v1454, %v1470
          %v1487 = vadd.f32 %v1455, %v1471
          %v1488 = vadd.f32 %v1456, %v1472
          %v1489 = vadd.f32 %v1457, %v1473
          %v1490 = vadd.f32 %v1458, %v1474
          %v1491 = vadd.f32 %v1459, %v1475
          %v1492 = vadd.f32 %v1460, %v1476
          %v1493 = vadd.f32 %v1461, %v1477
          %v1494 = vadd.f32 %v1462, %v1478
          %v1495 = vadd.f32 %v1463, %v1479
          %v1496 = vadd.f32 %v1464, %v1480
          %v1497 = vadd.f32 %v1465, %v1481
          %v1498 = vadd.f32 %v1466, %v1482
          %v1499 = vadd.f32 %v1467, %v1483
          %1500 = vst.msk [vmem:[#allocation3] sm:$0xff] %vm896, %v1484
          %1501 = vst.msk [vmem:[#allocation3 + $0x8] sm:$0xff] %vm896, %v1485
          %1502 = vst.msk [vmem:[#allocation3 + $0x10] sm:$0xff] %vm896, %v1486
          %1503 = vst.msk [vmem:[#allocation3 + $0x18] sm:$0xff] %vm896, %v1487
          %1504 = vst.msk [vmem:[#allocation3 + $0x20] sm:$0xff] %vm896, %v1488
          %1505 = vst.msk [vmem:[#allocation3 + $0x28] sm:$0xff] %vm896, %v1489
          %1506 = vst.msk [vmem:[#allocation3 + $0x30] sm:$0xff] %vm896, %v1490
          %1507 = vst.msk [vmem:[#allocation3 + $0x38] sm:$0xff] %vm896, %v1491
          %1508 = vst.msk [vmem:[#allocation3 + $0x40] sm:$0xff] %vm896, %v1492
          %1509 = vst.msk [vmem:[#allocation3 + $0x48] sm:$0xff] %vm896, %v1493
          %1510 = vst.msk [vmem:[#allocation3 + $0x50] sm:$0xff] %vm896, %v1494
          %1511 = vst.msk [vmem:[#allocation3 + $0x58] sm:$0xff] %vm896, %v1495
          %1512 = vst.msk [vmem:[#allocation3 + $0x60] sm:$0xff] %vm896, %v1496
          %1513 = vst.msk [vmem:[#allocation3 + $0x68] sm:$0xff] %vm896, %v1497
          %1514 = vst.msk [vmem:[#allocation3 + $0x70] sm:$0xff] %vm896, %v1498
          %1515 = vst.msk [vmem:[#allocation3 + $0x78] sm:$0xff] %vm896, %v1499
        $region82: #{tpu_custom_call.1} parent=65 // pred_fallthru
          _
        %p1516 = scmp.eq.s32.totalorder %s19, 1
        // Predicated region
        $region83: #{tpu_custom_call.1} parent=65 // pred_check
          %p1517 = pneg %p1516
        $region84: #{tpu_custom_call.1} parent=65 // pred_check_branch
          %1519 = sbr.rel (%p1517) target = $region86
        $region85: #{tpu_custom_call.1} parent=65 // pred_region
          %v1520 = vld [vmem:[#allocation3] sm:$0xff]
          %v1521 = vld [vmem:[#allocation3 + $0x8] sm:$0xff]
          %v1522 = vld [vmem:[#allocation3 + $0x10] sm:$0xff]
          %v1523 = vld [vmem:[#allocation3 + $0x18] sm:$0xff]
          %v1524 = vld [vmem:[#allocation3 + $0x20] sm:$0xff]
          %v1525 = vld [vmem:[#allocation3 + $0x28] sm:$0xff]
          %v1526 = vld [vmem:[#allocation3 + $0x30] sm:$0xff]
          %v1527 = vld [vmem:[#allocation3 + $0x38] sm:$0xff]
          %v1528 = vld [vmem:[#allocation3 + $0x40] sm:$0xff]
          %v1529 = vld [vmem:[#allocation3 + $0x48] sm:$0xff]
          %v1530 = vld [vmem:[#allocation3 + $0x50] sm:$0xff]
          %v1531 = vld [vmem:[#allocation3 + $0x58] sm:$0xff]
          %v1532 = vld [vmem:[#allocation3 + $0x60] sm:$0xff]
          %v1533 = vld [vmem:[#allocation3 + $0x68] sm:$0xff]
          %v1534 = vld [vmem:[#allocation3 + $0x70] sm:$0xff]
          %v1535 = vld [vmem:[#allocation3 + $0x78] sm:$0xff]
          %v1536 = vlog2.pop %v1520
          %v1537 = vmul.f32 %v1536, 0.6931472
          %v1538 = vlog2.pop %v1521
          %v1539 = vmul.f32 %v1538, 0.6931472
          %v1540 = vlog2.pop %v1522
          %v1541 = vmul.f32 %v1540, 0.6931472
          %v1542 = vlog2.pop %v1523
          %v1543 = vmul.f32 %v1542, 0.6931472
          %v1544 = vlog2.pop %v1524
          %v1545 = vmul.f32 %v1544, 0.6931472
          %v1546 = vlog2.pop %v1525
          %v1547 = vmul.f32 %v1546, 0.6931472
          %v1548 = vlog2.pop %v1526
          %v1549 = vmul.f32 %v1548, 0.6931472
          %v1550 = vlog2.pop %v1527
          %v1551 = vmul.f32 %v1550, 0.6931472
          %v1552 = vlog2.pop %v1528
          %v1553 = vmul.f32 %v1552, 0.6931472
          %v1554 = vlog2.pop %v1529
          %v1555 = vmul.f32 %v1554, 0.6931472
          %v1556 = vlog2.pop %v1530
          %v1557 = vmul.f32 %v1556, 0.6931472
          %v1558 = vlog2.pop %v1531
          %v1559 = vmul.f32 %v1558, 0.6931472
          %v1560 = vlog2.pop %v1532
          %v1561 = vmul.f32 %v1560, 0.6931472
          %v1562 = vlog2.pop %v1533
          %v1563 = vmul.f32 %v1562, 0.6931472
          %v1564 = vlog2.pop %v1534
          %v1565 = vmul.f32 %v1564, 0.6931472
          %v1566 = vlog2.pop %v1535
          %v1567 = vmul.f32 %v1566, 0.6931472
          %v1568 = vld [vmem:[#allocation2] sm:$0xff]
          %v1569 = vld [vmem:[#allocation2 + $0x8] sm:$0xff]
          %v1570 = vld [vmem:[#allocation2 + $0x10] sm:$0xff]
          %v1571 = vld [vmem:[#allocation2 + $0x18] sm:$0xff]
          %v1572 = vld [vmem:[#allocation2 + $0x20] sm:$0xff]
          %v1573 = vld [vmem:[#allocation2 + $0x28] sm:$0xff]
          %v1574 = vld [vmem:[#allocation2 + $0x30] sm:$0xff]
          %v1575 = vld [vmem:[#allocation2 + $0x38] sm:$0xff]
          %v1576 = vld [vmem:[#allocation2 + $0x40] sm:$0xff]
          %v1577 = vld [vmem:[#allocation2 + $0x48] sm:$0xff]
          %v1578 = vld [vmem:[#allocation2 + $0x50] sm:$0xff]
          %v1579 = vld [vmem:[#allocation2 + $0x58] sm:$0xff]
          %v1580 = vld [vmem:[#allocation2 + $0x60] sm:$0xff]
          %v1581 = vld [vmem:[#allocation2 + $0x68] sm:$0xff]
          %v1582 = vld [vmem:[#allocation2 + $0x70] sm:$0xff]
          %v1583 = vld [vmem:[#allocation2 + $0x78] sm:$0xff]
          %v1584 = vadd.f32 %v1537, %v1568
          %v1585 = vadd.f32 %v1539, %v1569
          %v1586 = vadd.f32 %v1541, %v1570
          %v1587 = vadd.f32 %v1543, %v1571
          %v1588 = vadd.f32 %v1545, %v1572
          %v1589 = vadd.f32 %v1547, %v1573
          %v1590 = vadd.f32 %v1549, %v1574
          %v1591 = vadd.f32 %v1551, %v1575
          %v1592 = vadd.f32 %v1553, %v1576
          %v1593 = vadd.f32 %v1555, %v1577
          %v1594 = vadd.f32 %v1557, %v1578
          %v1595 = vadd.f32 %v1559, %v1579
          %v1596 = vadd.f32 %v1561, %v1580
          %v1597 = vadd.f32 %v1563, %v1581
          %v1598 = vadd.f32 %v1565, %v1582
          %v1599 = vadd.f32 %v1567, %v1583
          %v1600 = vld [vmem:[#allocation4] sm:$0xff]
          %v1601 = vld [vmem:[#allocation4 + $0x8] sm:$0xff]
          %v1602 = vld [vmem:[#allocation4 + $0x10] sm:$0xff]
          %v1603 = vld [vmem:[#allocation4 + $0x18] sm:$0xff]
          %v1604 = vld [vmem:[#allocation4 + $0x20] sm:$0xff]
          %v1605 = vld [vmem:[#allocation4 + $0x28] sm:$0xff]
          %v1606 = vld [vmem:[#allocation4 + $0x30] sm:$0xff]
          %v1607 = vld [vmem:[#allocation4 + $0x38] sm:$0xff]
          %v1608 = vld [vmem:[#allocation4 + $0x40] sm:$0xff]
          %v1609 = vld [vmem:[#allocation4 + $0x48] sm:$0xff]
          %v1610 = vld [vmem:[#allocation4 + $0x50] sm:$0xff]
          %v1611 = vld [vmem:[#allocation4 + $0x58] sm:$0xff]
          %v1612 = vld [vmem:[#allocation4 + $0x60] sm:$0xff]
          %v1613 = vld [vmem:[#allocation4 + $0x68] sm:$0xff]
          %v1614 = vld [vmem:[#allocation4 + $0x70] sm:$0xff]
          %v1615 = vld [vmem:[#allocation4 + $0x78] sm:$0xff]
          %v1616 = vld [vmem:[#allocation5] sm:$0xff]
          %v1617 = vld [vmem:[#allocation5 + $0x8] sm:$0xff]
          %v1618 = vld [vmem:[#allocation5 + $0x10] sm:$0xff]
          %v1619 = vld [vmem:[#allocation5 + $0x18] sm:$0xff]
          %v1620 = vld [vmem:[#allocation5 + $0x20] sm:$0xff]
          %v1621 = vld [vmem:[#allocation5 + $0x28] sm:$0xff]
          %v1622 = vld [vmem:[#allocation5 + $0x30] sm:$0xff]
          %v1623 = vld [vmem:[#allocation5 + $0x38] sm:$0xff]
          %v1624 = vld [vmem:[#allocation5 + $0x40] sm:$0xff]
          %v1625 = vld [vmem:[#allocation5 + $0x48] sm:$0xff]
          %v1626 = vld [vmem:[#allocation5 + $0x50] sm:$0xff]
          %v1627 = vld [vmem:[#allocation5 + $0x58] sm:$0xff]
          %v1628 = vld [vmem:[#allocation5 + $0x60] sm:$0xff]
          %v1629 = vld [vmem:[#allocation5 + $0x68] sm:$0xff]
          %v1630 = vld [vmem:[#allocation5 + $0x70] sm:$0xff]
          %v1631 = vld [vmem:[#allocation5 + $0x78] sm:$0xff]
          %v1632 = vmul.f32 %v1584, %v1616
          %v1633 = vmul.f32 %v1585, %v1617
          %v1634 = vmul.f32 %v1586, %v1618
          %v1635 = vmul.f32 %v1587, %v1619
          %v1636 = vmul.f32 %v1588, %v1620
          %v1637 = vmul.f32 %v1589, %v1621
          %v1638 = vmul.f32 %v1590, %v1622
          %v1639 = vmul.f32 %v1591, %v1623
          %v1640 = vmul.f32 %v1592, %v1624
          %v1641 = vmul.f32 %v1593, %v1625
          %v1642 = vmul.f32 %v1594, %v1626
          %v1643 = vmul.f32 %v1595, %v1627
          %v1644 = vmul.f32 %v1596, %v1628
          %v1645 = vmul.f32 %v1597, %v1629
          %v1646 = vmul.f32 %v1598, %v1630
          %v1647 = vmul.f32 %v1599, %v1631
          %v1648 = vsub.f32 %v1600, %v1632
          %v1649 = vsub.f32 %v1601, %v1633
          %v1650 = vsub.f32 %v1602, %v1634
          %v1651 = vsub.f32 %v1603, %v1635
          %v1652 = vsub.f32 %v1604, %v1636
          %v1653 = vsub.f32 %v1605, %v1637
          %v1654 = vsub.f32 %v1606, %v1638
          %v1655 = vsub.f32 %v1607, %v1639
          %v1656 = vsub.f32 %v1608, %v1640
          %v1657 = vsub.f32 %v1609, %v1641
          %v1658 = vsub.f32 %v1610, %v1642
          %v1659 = vsub.f32 %v1611, %v1643
          %v1660 = vsub.f32 %v1612, %v1644
          %v1661 = vsub.f32 %v1613, %v1645
          %v1662 = vsub.f32 %v1614, %v1646
          %v1663 = vsub.f32 %v1615, %v1647
          %v1664 = vadd.f32 %v1616, 1e-07
          %v1665 = vadd.f32 %v1617, 1e-07
          %v1666 = vadd.f32 %v1618, 1e-07
          %v1667 = vadd.f32 %v1619, 1e-07
          %v1668 = vadd.f32 %v1620, 1e-07
          %v1669 = vadd.f32 %v1621, 1e-07
          %v1670 = vadd.f32 %v1622, 1e-07
          %v1671 = vadd.f32 %v1623, 1e-07
          %v1672 = vadd.f32 %v1624, 1e-07
          %v1673 = vadd.f32 %v1625, 1e-07
          %v1674 = vadd.f32 %v1626, 1e-07
          %v1675 = vadd.f32 %v1627, 1e-07
          %v1676 = vadd.f32 %v1628, 1e-07
          %v1677 = vadd.f32 %v1629, 1e-07
          %v1678 = vadd.f32 %v1630, 1e-07
          %v1679 = vadd.f32 %v1631, 1e-07
          %v1680 = vrcp.pop %v1664
          %v1681 = vmul.f32 %v1648, %v1680
          %v1682 = vrcp.pop %v1665
          %v1683 = vmul.f32 %v1649, %v1682
          %v1684 = vrcp.pop %v1666
          %v1685 = vmul.f32 %v1650, %v1684
          %v1686 = vrcp.pop %v1667
          %v1687 = vmul.f32 %v1651, %v1686
          %v1688 = vrcp.pop %v1668
          %v1689 = vmul.f32 %v1652, %v1688
          %v1690 = vrcp.pop %v1669
          %v1691 = vmul.f32 %v1653, %v1690
          %v1692 = vrcp.pop %v1670
          %v1693 = vmul.f32 %v1654, %v1692
          %v1694 = vrcp.pop %v1671
          %v1695 = vmul.f32 %v1655, %v1694
          %v1696 = vrcp.pop %v1672
          %v1697 = vmul.f32 %v1656, %v1696
          %v1698 = vrcp.pop %v1673
          %v1699 = vmul.f32 %v1657, %v1698
          %v1700 = vrcp.pop %v1674
          %v1701 = vmul.f32 %v1658, %v1700
          %v1702 = vrcp.pop %v1675
          %v1703 = vmul.f32 %v1659, %v1702
          %v1704 = vrcp.pop %v1676
          %v1705 = vmul.f32 %v1660, %v1704
          %v1706 = vrcp.pop %v1677
          %v1707 = vmul.f32 %v1661, %v1706
          %v1708 = vrcp.pop %v1678
          %v1709 = vmul.f32 %v1662, %v1708
          %v1710 = vrcp.pop %v1679
          %v1711 = vmul.f32 %v1663, %v1710
          %1712 = vst.msk [vmem:[%s327] sm:$0xff] %vm896, %v1681
          %1713 = vst.msk [vmem:[%s327 + $0x8] sm:$0xff] %vm896, %v1683
          %1714 = vst.msk [vmem:[%s327 + $0x10] sm:$0xff] %vm896, %v1685
          %1715 = vst.msk [vmem:[%s327 + $0x18] sm:$0xff] %vm896, %v1687
          %1716 = vst.msk [vmem:[%s327 + $0x20] sm:$0xff] %vm896, %v1689
          %1717 = vst.msk [vmem:[%s327 + $0x28] sm:$0xff] %vm896, %v1691
          %1718 = vst.msk [vmem:[%s327 + $0x30] sm:$0xff] %vm896, %v1693
          %1719 = vst.msk [vmem:[%s327 + $0x38] sm:$0xff] %vm896, %v1695
          %1720 = vst.msk [vmem:[%s327 + $0x40] sm:$0xff] %vm896, %v1697
          %1721 = vst.msk [vmem:[%s327 + $0x48] sm:$0xff] %vm896, %v1699
          %1722 = vst.msk [vmem:[%s327 + $0x50] sm:$0xff] %vm896, %v1701
          %1723 = vst.msk [vmem:[%s327 + $0x58] sm:$0xff] %vm896, %v1703
          %1724 = vst.msk [vmem:[%s327 + $0x60] sm:$0xff] %vm896, %v1705
          %1725 = vst.msk [vmem:[%s327 + $0x68] sm:$0xff] %vm896, %v1707
          %1726 = vst.msk [vmem:[%s327 + $0x70] sm:$0xff] %vm896, %v1709
          %1727 = vst.msk [vmem:[%s327 + $0x78] sm:$0xff] %vm896, %v1711
        $region86: #{tpu_custom_call.1} parent=65 // pred_fallthru
          _
        %s1728 = smul.u32 16, %s18
        %p1729 = scmp.lt.s32.totalorder %s1728, 31
        %s1730 = scalar_select %p1729, %s1728, 31
        %s1731 = smul.addr %s1730, 8
        %s1732 = scalar_lea.vmem %s3, %s1731
        // Predicated region
        $region87: #{tpu_custom_call.1} parent=65 // pred_check
          %p1733 = pneg %p124
        $region88: #{tpu_custom_call.1} parent=65 // pred_check_branch
          %1735 = sbr.rel (%p1733) target = $region90
        $region89: #{tpu_custom_call.1} parent=65 // pred_region
          %s1736 = smul.u32 16, %s18
        $region90: #{tpu_custom_call.1} parent=65 // pred_fallthru
          _
      $region66: #{tpu_custom_call.1} parent=5 // pred_fallthru
        _
      %p1737 = scmp.le.s32.totalorder 2, %s9
      // Predicated region
      $region91: #{tpu_custom_call.1} parent=5 // pred_check
        %p1738 = pneg %p1737
      $region92: #{tpu_custom_call.1} parent=5 // pred_check_branch
        %1740 = sbr.rel (%p1738) target = $region94
      $region93: #{tpu_custom_call.1} parent=5 // pred_region
        %s1741 = ssub.s32 %s9, 2
        // Predicated region
        $region95: #{tpu_custom_call.1} parent=93 // pred_check
          %p1742 = pneg %p130
        $region96: #{tpu_custom_call.1} parent=93 // pred_check_branch
          %1744 = sbr.rel (%p1742) target = $region98
        $region97: #{tpu_custom_call.1} parent=93 // pred_region
          %s1745 = smul.u32 16, %s20
          %p1746 = scmp.lt.s32.totalorder %s1745, 31
          %s1747 = scalar_select %p1746, %s1745, 31
          %s1748 = smul.addr %s1747, 8
          %s1749 = scalar_lea.vmem %s3, %s1748
        $region98: #{tpu_custom_call.1} parent=93 // pred_fallthru
          _
      $region94: #{tpu_custom_call.1} parent=5 // pred_fallthru
        _
    $region6: #{tpu_custom_call.1} parent=1 // loop_footer
      %s13 = sadd.s32 1, %s9
    $region7: #{tpu_custom_call.1} parent=1 // loop_footer_branch
      %8 = sbr.rel target = $region3
    $region8: #{tpu_custom_call.1} parent=1 // loop_exit
      _

</llo_original>
